<compile_context>
chip_gen: v7x
topology: tpu7x:2x2x1
jax: 0.10.0
libtpu: 0.0.40
codegen_flags: <defaults>
</compile_context>

<pallas_src>
import functools

import jax
import jax.numpy as jnp
from jax.experimental import pallas as pl
from jax.experimental.pallas import tpu as pltpu


def _round_up(x, m):
    return (x + m - 1) // m * m


# ---------------------------------------------------------------------------
# window partition / reverse (exact replication of the PyTorch view/permute/view)
# ---------------------------------------------------------------------------
def window_partition(x, window_size):
    """x: (B, C, T, H, W) -> windows: (N, C, ws, ws)."""
    B, C, T, H, W = x.shape
    ws = window_size
    x = x.reshape(B, C, T // ws, ws, H // ws, ws, W // ws, ws)
    x = jnp.transpose(x, (0, 1, 2, 4, 6, 3, 5, 7))
    return x.reshape(-1, C, ws, ws)


def window_reverse(windows, window_size, B, T, H, W):
    """windows: (N, C, ws, ws) -> (B, C, T, H, W)."""
    N, C, _, _ = windows.shape
    ws = window_size
    x = windows.reshape(B, C, T // ws, H // ws, W // ws, ws, ws, ws)
    x = jnp.transpose(x, (0, 1, 2, 5, 3, 6, 4, 7))
    return x.reshape(B, -1, T, H, W)


# ---------------------------------------------------------------------------
# Pallas kernel: embedded-Gaussian non-local attention over a slab of WB windows
# ---------------------------------------------------------------------------
def _window_nl_kernel(x_ref, wqkv_ref, bqkv_ref, wo_ref, bo_ref, o_ref, *, Lp, L):
    """
    x_ref    : (C, S)      S = WB*Lp lane-dense activation slab (f32)
    wqkv_ref : (3*Cip, C)  packed theta/phi/g 1x1 weights (bf16, rows padded to Cip)
    bqkv_ref : (3*Cip, 1)  packed theta/phi/g biases (f32)
    wo_ref   : (Co, Cip)   output 1x1 projection weight (bf16, cols padded)
    bo_ref   : (Co, 1)     output 1x1 projection bias (f32)
    o_ref    : (Co, S)
    """
    S = x_ref.shape[1]
    cip = wqkv_ref.shape[0] // 3

    x = x_ref[...]                                        # (C, S) f32
    xb = x.astype(jnp.bfloat16)

    # fused theta/phi/g 1x1 projections: one MXU matmul with lane-dense free dim
    qkv = jnp.dot(wqkv_ref[...], xb,
                  preferred_element_type=jnp.float32) + bqkv_ref[...]   # (3Cip, S)

    # Cip is a multiple of 8 -> tile-aligned row slices (no relayout copies)
    theta = qkv[0 * cip:1 * cip, :].astype(jnp.bfloat16)  # (Cip, S)
    phi = qkv[1 * cip:2 * cip, :].astype(jnp.bfloat16)    # (Cip, S)
    g = qkv[2 * cip:3 * cip, :].astype(jnp.bfloat16)      # (Cip, S)

    # affinity f[i, j] = <theta[:, i], phi[:, j]>  (queries on sublanes, keys on lanes)
    f = jax.lax.dot_general(theta, phi, (((0,), (0,)), ((), ())),
                            preferred_element_type=jnp.float32)         # (S, S)

    # block-diagonal window mask generated in-kernel (no HBM operand, no VMEM buf)
    qpos = jax.lax.broadcasted_iota(jnp.int32, (S, S), 0)
    kpos = jax.lax.broadcasted_iota(jnp.int32, (S, S), 1)
    if (Lp & (Lp - 1)) == 0:                              # power-of-two lane span
        shift = Lp.bit_length() - 1
        same = (qpos >> shift) == (kpos >> shift)
        if Lp != L:                                       # padded lanes never valid keys
            same = jnp.logical_and(same, (kpos & (Lp - 1)) < L)
    else:                                                 # general fallback (rare)
        same = (qpos // Lp) == (kpos // Lp)
        if Lp != L:
            same = jnp.logical_and(same, (kpos % Lp) < L)
    f = jnp.where(same, f, jnp.float32(-1e30))

    # softmax over keys; normalization deferred until after the value matmul
    m = jnp.max(f, axis=-1, keepdims=True)                # (S, 1)
    p = jnp.exp(f - m)                                    # (S, S) unnormalized
    denom = jnp.sum(p, axis=-1, keepdims=True)            # (S, 1)

    # y^T[i, c] = sum_j p[i, j] * g[c, j]   ((S,S) stays in its natural orientation)
    yt = jax.lax.dot_general(p.astype(jnp.bfloat16), g, (((1,), (1,)), ((), ())),
                             preferred_element_type=jnp.float32)        # (S, Cip)
    yt = yt * pl.reciprocal(denom, approx=True)           # post-matmul normalization (EUP)

    # output 1x1 projection + bias + residual;  z[o, i] = sum_c wo[o, c] * yt[i, c]
    z = jax.lax.dot_general(wo_ref[...], yt.astype(jnp.bfloat16),
                            (((1,), (1,)), ((), ())),
                            preferred_element_type=jnp.float32)         # (Co, S)
    o_ref[...] = (z + bo_ref[...] + x).astype(o_ref.dtype)


# ---------------------------------------------------------------------------
# tiling / wrapper helpers
# ---------------------------------------------------------------------------
def _default_target_lanes():
    """MXU free-dim width per generation: 128 on v5e, 256 on v6e/v7x."""
    try:
        kind = jax.devices()[0].device_kind.lower()
    except Exception:
        return 256
    if "v5e" in kind or "v5 lite" in kind or "v5lite" in kind:
        return 128
    return 256


def _choose_layout(num_windows, L, target_lanes):
    """Pick (windows_per_block WB, padded per-window lane span Lp).

    WB*Lp must be a multiple of 128 (unmasked vector stores) and is kept at the
    MXU free-dim width: the masked (S,S) affinity wastes a factor WB of MXU/EUP
    work, so S is never grown past the target.  Prefer >=2 grid steps (and even
    counts) so megacore parts get balanced work.
    """
    def search(Lp):
        cands = []
        for wb in range(1, num_windows + 1):
            if num_windows % wb:
                continue
            lanes = wb * Lp
            if lanes % 128:
                continue
            if lanes > target_lanes and wb > 1:
                continue
            grid = num_windows // wb
            cands.append((lanes <= target_lanes, grid >= 2, lanes, grid % 2 == 0, wb))
        return max(cands)[-1] if cands else None

    wb = search(L)
    if wb is not None:
        return wb, L
    # pad each window's lane span to the next power of two (e.g. ws=7 -> L=49 -> 64)
    Lp = max(8, 1 << max(L - 1, 1).bit_length())
    wb = search(Lp)
    if wb is not None:
        return wb, Lp
    # last resort: one step covering the full (legal: block dim == array dim)
    return num_windows, Lp


def _vmem_estimate_bytes(C, Co, Cip, S):
    in_out = 2 * (C * S + Co * S) * 4                     # double-buffered slab in/out
    weights = (3 * Cip * C + Co * Cip) * 2 + (3 * Cip + Co) * 4
    interm = (3 * Cip * S + 2 * S * S + S * Cip + Co * S) * 4
    return in_out + weights + interm


def init_params(key, in_channels, inner_channels=None, out_channels=None):
    inner = inner_channels if inner_channels else in_channels // 2
    out = out_channels if out_channels else in_channels
    ks = jax.random.split(key, 8)
    scale_in = 1.0 / jnp.sqrt(in_channels)
    scale_inner = 1.0 / jnp.sqrt(inner)
    return {
        "w_theta": jax.random.normal(ks[0], (inner, in_channels), jnp.float32) * scale_in,
        "b_theta": jax.random.normal(ks[1], (inner, 1), jnp.float32) * 0.01,
        "w_phi":   jax.random.normal(ks[2], (inner, in_channels), jnp.float32) * scale_in,
        "b_phi":   jax.random.normal(ks[3], (inner, 1), jnp.float32) * 0.01,
        "w_g":     jax.random.normal(ks[4], (inner, in_channels), jnp.float32) * scale_in,
        "b_g":     jax.random.normal(ks[5], (inner, 1), jnp.float32) * 0.01,
        "w_out":   jax.random.normal(ks[6], (out, inner), jnp.float32) * scale_inner,
        "b_out":   jax.random.normal(ks[7], (out, 1), jnp.float32) * 0.01,
    }


def swin_transformer_block(x, params, window_size, *, target_lanes=None):
    """Forward pass of SwinTransformerBlock.  x: (B, C, T, H, W) float32."""
    B, C, T, H, W = x.shape
    ws = window_size
    if T % ws or H % ws or W % ws:
        raise ValueError("T/H/W must be divisible by window_size")
    L = ws * ws

    Ci = params["w_theta"].shape[0]
    Co = params["w_out"].shape[0]
    if Co != C:
        raise ValueError("non-local residual requires out_channels == in_channels "
                         f"(got Co={Co}, C={C})")

    # window partition (glue; XLA fuses the reshape/transpose chain into one copy)
    xw = window_partition(x, ws)                              # (N, C, ws, ws)
    N = xw.shape[0]

    if target_lanes is None:
        target_lanes = _default_target_lanes()
    WB, Lp = _choose_layout(N, L, target_lanes)
    S = WB * Lp

    # lane-dense slab: window n occupies lanes [n*Lp, (n+1)*Lp)
    xw3 = xw.reshape(N, C, L)
    if Lp != L:
        xw3 = jnp.pad(xw3, ((0, 0), (0, 0), (0, Lp - L)))
    x_slab = jnp.transpose(xw3, (1, 0, 2)).reshape(C, N * Lp)

    # pack theta/phi/g into one weight, rows padded to a sublane multiple
    Cip = _round_up(Ci, 8)
    w_qkv = jnp.zeros((3 * Cip, C), jnp.float32)
    w_qkv = w_qkv.at[0 * Cip:0 * Cip + Ci].set(params["w_theta"])
    w_qkv = w_qkv.at[1 * Cip:1 * Cip + Ci].set(params["w_phi"])
    w_qkv = w_qkv.at[2 * Cip:2 * Cip + Ci].set(params["w_g"])
    w_qkv = w_qkv.astype(jnp.bfloat16)                        # (3Cip, C)
    b_qkv = jnp.zeros((3 * Cip, 1), jnp.float32)
    b_qkv = b_qkv.at[0 * Cip:0 * Cip + Ci].set(params["b_theta"])
    b_qkv = b_qkv.at[1 * Cip:1 * Cip + Ci].set(params["b_phi"])
    b_qkv = b_qkv.at[2 * Cip:2 * Cip + Ci].set(params["b_g"])
    w_out = jnp.zeros((Co, Cip), jnp.float32)
    w_out = w_out.at[:, :Ci].set(params["w_out"]).astype(jnp.bfloat16)   # (Co, Cip)
    b_out = params["b_out"].astype(jnp.float32)               # (Co, 1)

    grid = (N // WB,)
    const = lambda n: (0, 0)
    weight_mode = pl.Buffered(1)          # constant-index operands: single buffer

    grid_spec = pltpu.PrefetchScalarGridSpec(
        num_scalar_prefetch=0,
        grid=grid,
        in_specs=[
            pl.BlockSpec((C, S), lambda n: (0, n)),                       # activations
            pl.BlockSpec((3 * Cip, C), const, pipeline_mode=weight_mode), # packed qkv w
            pl.BlockSpec((3 * Cip, 1), const, pipeline_mode=weight_mode), # packed qkv b
            pl.BlockSpec((Co, Cip), const, pipeline_mode=weight_mode),    # out proj w
            pl.BlockSpec((Co, 1), const, pipeline_mode=weight_mode),      # out proj b
        ],
        out_specs=pl.BlockSpec((Co, S), lambda n: (0, n)),
    )

    kernel = functools.partial(_window_nl_kernel, Lp=Lp, L=L)
    vmem_limit = int(min(max(2 * _vmem_estimate_bytes(C, Co, Cip, S), 32 * 2**20),
                         60 * 2**20))

    out_slab = pl.pallas_call(
        kernel,
        out_shape=jax.ShapeDtypeStruct((Co, N * Lp), jnp.float32),
        grid_spec=grid_spec,
        compiler_params=pltpu.CompilerParams(
            dimension_semantics=("parallel",),
            vmem_limit_bytes=vmem_limit),
    )(x_slab, w_qkv, b_qkv, w_out, b_out)

    out3 = jnp.transpose(out_slab.reshape(Co, N, Lp), (1, 0, 2))   # (N, Co, Lp)
    if Lp != L:
        out3 = out3[:, :, :L]
    attn_windows = out3.reshape(N, Co, ws, ws)

    # window reverse (glue)
    return window_reverse(attn_windows, ws, B, T, H, W)


# ---------------------------------------------------------------------------
# pure-JAX reference (f32) for a tolerance check
# ---------------------------------------------------------------------------
def _reference_forward(x, params, window_size):
    ws = window_size
    B, C, T, H, W = x.shape
    xw = window_partition(x, ws)                              # (N, C, ws, ws)
    N = xw.shape[0]
    xl = xw.reshape(N, C, ws * ws)
    th = jnp.einsum("ck,nkl->ncl", params["w_theta"], xl) + params["b_theta"]
    ph = jnp.einsum("ck,nkl->ncl", params["w_phi"], xl) + params["b_phi"]
    gg = jnp.einsum("ck,nkl->ncl", params["w_g"], xl) + params["b_g"]
    f = jnp.einsum("nci,ncj->nij", th, ph)
    p = jax.nn.softmax(f, axis=-1)
    y = jnp.einsum("nij,ncj->nci", p, gg)
    z = jnp.einsum("oc,ncl->nol", params["w_out"], y) + params["b_out"] + xl
    return window_reverse(z.reshape(N, C, ws, ws), ws, B, T, H, W)


if __name__ == "__main__":
    key = jax.random.PRNGKey(0)
    k_x, k_p = jax.random.split(key)

    # small shapes consistent with the module: B=2, C=8, T=4, H=8, W=8, window_size=4
    B, C, T, H, W = 2, 8, 4, 8, 8
    window_size = 4

    x = jax.random.normal(k_x, (B, C, T, H, W), jnp.float32)
    params = init_params(k_p, in_channels=C)

    out = jax.block_until_ready(swin_transformer_block(x, params, window_size))

    assert out.shape == (B, C, T, H, W), out.shape
    assert bool(jnp.all(jnp.isfinite(out)))

    # loose tolerance vs f32 reference (bf16 MXU inputs + approx reciprocal)
    ref = jax.block_until_ready(_reference_forward(x, params, window_size))
    max_err = float(jnp.max(jnp.abs(out - ref)))
    mean_err = float(jnp.mean(jnp.abs(out - ref)))
    assert max_err < 0.3 and mean_err < 0.03, (max_err, mean_err)

    print("KERNEL_OK")
</pallas_src>

<mosaic_0001>
module attributes {stable_mosaic.version = 11 : i64} {
  func.func @_window_nl_kernel(%arg0: i32, %arg1: memref<8x256xf32, #tpu.memory_space<vmem>>, %arg2: memref<24x8xbf16, #tpu.memory_space<vmem>>, %arg3: memref<24x1xf32, #tpu.memory_space<vmem>>, %arg4: memref<8x8xbf16, #tpu.memory_space<vmem>>, %arg5: memref<8x1xf32, #tpu.memory_space<vmem>>, %arg6: memref<8x256xf32, #tpu.memory_space<vmem>>) attributes {dimension_semantics = [#tpu.dimension_semantics<parallel>], iteration_bounds = array<i64: 2>, scalar_prefetch = 0 : i64, scratch_operands = 0 : i64, tpu.core_type = #tpu.core_type<tc>, window_params = [{transform_indices = @transform_0, window_bounds = array<i64: 8, 256>}, {pipeline_mode = #tpu.pipeline_mode<synchronous>, transform_indices = @transform_1, window_bounds = array<i64: 24, 8>}, {pipeline_mode = #tpu.pipeline_mode<synchronous>, transform_indices = @transform_2, window_bounds = array<i64: 24, 1>}, {pipeline_mode = #tpu.pipeline_mode<synchronous>, transform_indices = @transform_3, window_bounds = array<i64: 8, 8>}, {pipeline_mode = #tpu.pipeline_mode<synchronous>, transform_indices = @transform_4, window_bounds = array<i64: 8, 1>}, {transform_indices = @transform_5, window_bounds = array<i64: 8, 256>}]} {
    %c0 = arith.constant 0 : index
    %c0_0 = arith.constant 0 : index
    %0 = vector.load %arg1[%c0, %c0_0] : memref<8x256xf32, #tpu.memory_space<vmem>>, vector<8x256xf32>
    %1 = arith.truncf %0 : vector<8x256xf32> to vector<8x256xbf16>
    %c0_1 = arith.constant 0 : index
    %c0_2 = arith.constant 0 : index
    %2 = vector.load %arg2[%c0_1, %c0_2] : memref<24x8xbf16, #tpu.memory_space<vmem>>, vector<24x8xbf16>
    %cst = arith.constant dense<0.000000e+00> : vector<24x256xf32>
    %3 = tpu.matmul %2, %1, %cst {dimension_numbers = #tpu.dot_dimension_numbers<[1], [0], [0], [1], [0, 0, 1, 1], [], []>} : vector<24x8xbf16>, vector<8x256xbf16>, vector<24x256xf32> -> vector<24x256xf32>
    %c0_3 = arith.constant 0 : index
    %c0_4 = arith.constant 0 : index
    %4 = vector.load %arg3[%c0_3, %c0_4] : memref<24x1xf32, #tpu.memory_space<vmem>>, vector<24x1xf32>
    %5 = vector.broadcast %4 : vector<24x1xf32> to vector<24x256xf32>
    %6 = arith.addf %3, %5 : vector<24x256xf32>
    %7 = vector.extract_strided_slice %6 {offsets = [0, 0], sizes = [8, 256], strides = [1, 1]} : vector<24x256xf32> to vector<8x256xf32>
    %8 = arith.truncf %7 : vector<8x256xf32> to vector<8x256xbf16>
    %9 = vector.extract_strided_slice %6 {offsets = [8, 0], sizes = [8, 256], strides = [1, 1]} : vector<24x256xf32> to vector<8x256xf32>
    %10 = arith.truncf %9 : vector<8x256xf32> to vector<8x256xbf16>
    %11 = vector.extract_strided_slice %6 {offsets = [16, 0], sizes = [8, 256], strides = [1, 1]} : vector<24x256xf32> to vector<8x256xf32>
    %12 = arith.truncf %11 : vector<8x256xf32> to vector<8x256xbf16>
    %cst_5 = arith.constant dense<0.000000e+00> : vector<256x256xf32>
    %13 = tpu.matmul %8, %10, %cst_5 {dimension_numbers = #tpu.dot_dimension_numbers<[0], [0], [1], [1], [0, 1, 1, 1], [], []>} : vector<8x256xbf16>, vector<8x256xbf16>, vector<256x256xf32> -> vector<256x256xf32>
    %14 = tpu.iota {dimensions = array<i32: 0>} : vector<256x256xi32>
    %15 = tpu.iota {dimensions = array<i32: 1>} : vector<256x256xi32>
    %c4_i32 = arith.constant 4 : i32
    %16 = vector.broadcast %c4_i32 : i32 to vector<256x256xi32>
    %17 = arith.shrsi %14, %16 : vector<256x256xi32>
    %c4_i32_6 = arith.constant 4 : i32
    %18 = vector.broadcast %c4_i32_6 : i32 to vector<256x256xi32>
    %19 = arith.shrsi %15, %18 : vector<256x256xi32>
    %20 = arith.cmpi eq, %17, %19 : vector<256x256xi32>
    %cst_7 = arith.constant -1.000000e+30 : f32
    %21 = vector.broadcast %cst_7 : f32 to vector<256x256xf32>
    %22 = arith.select %20, %13, %21 : vector<256x256xi1>, vector<256x256xf32>
    %cst_8 = arith.constant dense<0xFF800000> : vector<256xf32>
    %23 = vector.multi_reduction <maximumf>, %22, %cst_8 [1] : vector<256x256xf32> to vector<256xf32>
    %24 = vector.shape_cast %23 : vector<256xf32> to vector<256x1xf32>
    %25 = vector.broadcast %24 : vector<256x1xf32> to vector<256x256xf32>
    %26 = arith.subf %22, %25 : vector<256x256xf32>
    %27 = math.exp %26 : vector<256x256xf32>
    %cst_9 = arith.constant dense<0.000000e+00> : vector<256xf32>
    %28 = vector.multi_reduction <add>, %27, %cst_9 [1] : vector<256x256xf32> to vector<256xf32>
    %29 = vector.shape_cast %28 : vector<256xf32> to vector<256x1xf32>
    %30 = arith.truncf %27 : vector<256x256xf32> to vector<256x256xbf16>
    %cst_10 = arith.constant dense<0.000000e+00> : vector<256x8xf32>
    %31 = tpu.matmul %30, %12, %cst_10 {dimension_numbers = #tpu.dot_dimension_numbers<[1], [1], [0], [0], [0, 0, 1, 0], [], []>} : vector<256x256xbf16>, vector<8x256xbf16>, vector<256x8xf32> -> vector<256x8xf32>
    %32 = tpu.reciprocal %29 {approx = true} : vector<256x1xf32> -> vector<256x1xf32>
    %33 = vector.broadcast %32 : vector<256x1xf32> to vector<256x8xf32>
    %34 = arith.mulf %31, %33 : vector<256x8xf32>
    %c0_11 = arith.constant 0 : index
    %c0_12 = arith.constant 0 : index
    %35 = vector.load %arg4[%c0_11, %c0_12] : memref<8x8xbf16, #tpu.memory_space<vmem>>, vector<8x8xbf16>
    %36 = arith.truncf %34 : vector<256x8xf32> to vector<256x8xbf16>
    %cst_13 = arith.constant dense<0.000000e+00> : vector<8x256xf32>
    %37 = tpu.matmul %35, %36, %cst_13 {dimension_numbers = #tpu.dot_dimension_numbers<[1], [1], [0], [0], [0, 0, 1, 0], [], []>} : vector<8x8xbf16>, vector<256x8xbf16>, vector<8x256xf32> -> vector<8x256xf32>
    %c0_14 = arith.constant 0 : index
    %c0_15 = arith.constant 0 : index
    %38 = vector.load %arg5[%c0_14, %c0_15] : memref<8x1xf32, #tpu.memory_space<vmem>>, vector<8x1xf32>
    %39 = vector.broadcast %38 : vector<8x1xf32> to vector<8x256xf32>
    %40 = arith.addf %37, %39 : vector<8x256xf32>
    %41 = arith.addf %40, %0 : vector<8x256xf32>
    %c0_16 = arith.constant 0 : index
    %c0_17 = arith.constant 0 : index
    %42 = vector.load %arg6[%c0_16, %c0_17] : memref<8x256xf32, #tpu.memory_space<vmem>>, vector<8x256xf32>
    tpu.vector_store %arg6[%c0_16, %c0_17], %41 {strides = array<i32>} : memref<8x256xf32, #tpu.memory_space<vmem>>, vector<8x256xf32>,
    return
  }
  func.func @transform_0(%arg0: i32) -> (i32, i32) {
    %c0_i32 = arith.constant 0 : i32
    %c0_i32_0 = arith.constant 0 : i32
    return %c0_i32, %arg0 : i32, i32
  }
  func.func @transform_1(%arg0: i32) -> (i32, i32) {
    %c0_i32 = arith.constant 0 : i32
    %c0_i32_0 = arith.constant 0 : i32
    %c0_i32_1 = arith.constant 0 : i32
    return %c0_i32, %c0_i32_0 : i32, i32
  }
  func.func @transform_2(%arg0: i32) -> (i32, i32) {
    %c0_i32 = arith.constant 0 : i32
    %c0_i32_0 = arith.constant 0 : i32
    %c0_i32_1 = arith.constant 0 : i32
    return %c0_i32, %c0_i32_0 : i32, i32
  }
  func.func @transform_3(%arg0: i32) -> (i32, i32) {
    %c0_i32 = arith.constant 0 : i32
    %c0_i32_0 = arith.constant 0 : i32
    %c0_i32_1 = arith.constant 0 : i32
    return %c0_i32, %c0_i32_0 : i32, i32
  }
  func.func @transform_4(%arg0: i32) -> (i32, i32) {
    %c0_i32 = arith.constant 0 : i32
    %c0_i32_0 = arith.constant 0 : i32
    %c0_i32_1 = arith.constant 0 : i32
    return %c0_i32, %c0_i32_0 : i32, i32
  }
  func.func @transform_5(%arg0: i32) -> (i32, i32) {
    %c0_i32 = arith.constant 0 : i32
    %c0_i32_0 = arith.constant 0 : i32
    return %c0_i32, %arg0 : i32, i32
  }
}

</mosaic_0001>

<llo_original>
// kernel: tpu_custom_call.1
$region0: #{tpu_custom_call.1}
  #allocation0 [shape = 'u32[]', space=smem, size = 0x4, offset = 0x4, fixed_abs, tag = 'smem constant byte address 0x4 - core index']
  #allocation1 [shape = 'u32[144,128]{1,0:T(1,128)}', space=vmem, size = 0x12000, scoped, tag = 'internal scratch']
  %s0 = inlined_call_operand.vmem [shape: f32[8,512], index: 0, kind: input, shape index: {}]
  %s1 = inlined_call_operand.vmem [shape: bf16[24,8], index: 1, kind: input, shape index: {}]
  %s2 = inlined_call_operand.vmem [shape: f32[24,1], index: 2, kind: input, shape index: {}]
  %s3 = inlined_call_operand.vmem [shape: bf16[8,8], index: 3, kind: input, shape index: {}]
  %s4 = inlined_call_operand.vmem [shape: f32[8,1], index: 4, kind: input, shape index: {}]
  %s5 = inlined_call_operand.hbm [shape: f32[8,512], index: 5, kind: output, shape index: {}]
  %s6 = sld [smem:[#allocation0]]
  $region53: #{tpu_custom_call.1} parent=0
    _
  %s8 = ssub.s32 1, %s6
  %s9 = scalar_select 0, %s8, %s6
  $region1: #{tpu_custom_call.1} parent=0
    #allocation2 [shape = 'u8[16384]{0}', space=vmem, size = 0x4000, scoped, tag = 'output window, operand 0']
    #allocation3 [shape = 's32[2]{0}', space=sflag, size = 0x8, scoped, tag = 'scoped memory for tpu_custom_call.1']
    %10 = vsyncpa [#allocation3], 0
    %s11 = scalar_lea.sflag [#allocation3], 1
    %12 = vsyncpa %s11, 0
    loop: start=0, step=1, limit=4
    $region2: #{tpu_custom_call.1} parent=1 // loop_pre_header
      _
    $region3: #{tpu_custom_call.1} parent=1 // loop_header
      %s14 = sphi 0, %s18
      %p15 = scmp.ge.s32.totalorder %s14, 4
      %s24 = sphi 0, %s26
      %s27 = sphi 0, %s24
      %s28 = sphi 0, %s27
      %s44 = sphi 0, %s28
      %s48 = sphi 0, %s48
      %s50 = sphi 0, %s48
      %s51 = sphi 0, %s50
      %s65 = sphi 0, %s51
      %s69 = sphi 0, %s69
      %s71 = sphi 0, %s69
      %s72 = sphi 0, %s71
      %s86 = sphi 0, %s72
      %s90 = sphi 0, %s90
      %s92 = sphi 0, %s90
      %s93 = sphi 0, %s92
      %s107 = sphi 0, %s93
      %s111 = sphi 0, %s111
      %s113 = sphi 0, %s111
      %s114 = sphi 0, %s113
      %s128 = sphi 0, %s114
      %s134 = sphi 0, %s136
      %s137 = sphi 0, %s134
      %s138 = sphi 0, %s137
      %s154 = sphi 0, %s138
    $region4: #{tpu_custom_call.1} parent=1 // loop_header_branch
      %17 = sbr.rel (%p15) target = $region8
    $region5: #{tpu_custom_call.1} parent=1 // loop_body
      %s19 = ssub.s32 %s14, 1
      %s20 = ssub.s32 %s14, 2
      %s21 = sadd.s32 %s14, 1
      %s22 = ssub.s32 %s14, %s21
      %p23 = scmp.eq.s32.totalorder %s22, 0
      %s25 = sadd.s32 %s24, 1
      %s26 = scalar_select %p23, %s24, %s25
      %p29 = pneg %p23
      %p30 = scmp.eq.s32.totalorder %s14, 1
      %p31 = por %p29, %p30
      %p32 = scmp.ne.s32.totalorder %s24, %s27
      %p33 = scmp.eq.s32.totalorder %s14, 0
      %p34 = por %p32, %p33
      %p35 = scmp.ne.s32.totalorder %s24, %s27
      %p36 = scmp.eq.s32.totalorder %s19, 1
      %p37 = por %p35, %p36
      %p38 = scmp.ne.s32.totalorder %s27, %s28
      %p39 = scmp.eq.s32.totalorder %s19, 0
      %p40 = por %p38, %p39
      %p41 = scmp.ne.s32.totalorder %s27, %s28
      %p42 = scmp.eq.s32.totalorder %s20, 1
      %p43 = por %p41, %p42
      %p45 = scmp.ne.s32.totalorder %s28, %s44
      %p46 = scmp.eq.s32.totalorder %s20, 0
      %p47 = por %p45, %p46
      %s49 = sadd.s32 %s48, 1
      %p52 = scmp.eq.s32.totalorder %s14, 1
      %p53 = scmp.ne.s32.totalorder %s48, %s50
      %p54 = scmp.eq.s32.totalorder %s14, 0
      %p55 = por %p53, %p54
      %p56 = scmp.ne.s32.totalorder %s48, %s50
      %p57 = scmp.eq.s32.totalorder %s19, 1
      %p58 = por %p56, %p57
      %p59 = scmp.ne.s32.totalorder %s50, %s51
      %p60 = scmp.eq.s32.totalorder %s19, 0
      %p61 = por %p59, %p60
      %p62 = scmp.ne.s32.totalorder %s50, %s51
      %p63 = scmp.eq.s32.totalorder %s20, 1
      %p64 = por %p62, %p63
      %p66 = scmp.ne.s32.totalorder %s51, %s65
      %p67 = scmp.eq.s32.totalorder %s20, 0
      %p68 = por %p66, %p67
      %s70 = sadd.s32 %s69, 1
      %p73 = scmp.eq.s32.totalorder %s14, 1
      %p74 = scmp.ne.s32.totalorder %s69, %s71
      %p75 = scmp.eq.s32.totalorder %s14, 0
      %p76 = por %p74, %p75
      %p77 = scmp.ne.s32.totalorder %s69, %s71
      %p78 = scmp.eq.s32.totalorder %s19, 1
      %p79 = por %p77, %p78
      %p80 = scmp.ne.s32.totalorder %s71, %s72
      %p81 = scmp.eq.s32.totalorder %s19, 0
      %p82 = por %p80, %p81
      %p83 = scmp.ne.s32.totalorder %s71, %s72
      %p84 = scmp.eq.s32.totalorder %s20, 1
      %p85 = por %p83, %p84
      %p87 = scmp.ne.s32.totalorder %s72, %s86
      %p88 = scmp.eq.s32.totalorder %s20, 0
      %p89 = por %p87, %p88
      %s91 = sadd.s32 %s90, 1
      %p94 = scmp.eq.s32.totalorder %s14, 1
      %p95 = scmp.ne.s32.totalorder %s90, %s92
      %p96 = scmp.eq.s32.totalorder %s14, 0
      %p97 = por %p95, %p96
      %p98 = scmp.ne.s32.totalorder %s90, %s92
      %p99 = scmp.eq.s32.totalorder %s19, 1
      %p100 = por %p98, %p99
      %p101 = scmp.ne.s32.totalorder %s92, %s93
      %p102 = scmp.eq.s32.totalorder %s19, 0
      %p103 = por %p101, %p102
      %p104 = scmp.ne.s32.totalorder %s92, %s93
      %p105 = scmp.eq.s32.totalorder %s20, 1
      %p106 = por %p104, %p105
      %p108 = scmp.ne.s32.totalorder %s93, %s107
      %p109 = scmp.eq.s32.totalorder %s20, 0
      %p110 = por %p108, %p109
      %s112 = sadd.s32 %s111, 1
      %p115 = scmp.eq.s32.totalorder %s14, 1
      %p116 = scmp.ne.s32.totalorder %s111, %s113
      %p117 = scmp.eq.s32.totalorder %s14, 0
      %p118 = por %p116, %p117
      %p119 = scmp.ne.s32.totalorder %s111, %s113
      %p120 = scmp.eq.s32.totalorder %s19, 1
      %p121 = por %p119, %p120
      %p122 = scmp.ne.s32.totalorder %s113, %s114
      %p123 = scmp.eq.s32.totalorder %s19, 0
      %p124 = por %p122, %p123
      %p125 = scmp.ne.s32.totalorder %s113, %s114
      %p126 = scmp.eq.s32.totalorder %s20, 1
      %p127 = por %p125, %p126
      %p129 = scmp.ne.s32.totalorder %s114, %s128
      %p130 = scmp.eq.s32.totalorder %s20, 0
      %p131 = por %p129, %p130
      %s132 = ssub.s32 %s14, %s21
      %p133 = scmp.eq.s32.totalorder %s132, 0
      %s135 = sadd.s32 %s134, 1
      %s136 = scalar_select %p133, %s134, %s135
      %p139 = pneg %p133
      %p140 = scmp.eq.s32.totalorder %s14, 1
      %p141 = por %p139, %p140
      %p142 = scmp.ne.s32.totalorder %s134, %s137
      %p143 = scmp.eq.s32.totalorder %s14, 0
      %p144 = por %p142, %p143
      %p145 = scmp.ne.s32.totalorder %s134, %s137
      %p146 = scmp.eq.s32.totalorder %s19, 1
      %p147 = por %p145, %p146
      %p148 = scmp.ne.s32.totalorder %s137, %s138
      %p149 = scmp.eq.s32.totalorder %s19, 0
      %p150 = por %p148, %p149
      %p151 = scmp.ne.s32.totalorder %s137, %s138
      %p152 = scmp.eq.s32.totalorder %s20, 1
      %p153 = por %p151, %p152
      %p155 = scmp.ne.s32.totalorder %s138, %s154
      %p156 = scmp.eq.s32.totalorder %s20, 0
      %p157 = por %p155, %p156
      %p158 = scmp.le.s32.totalorder 1, %s14
      %p159 = scmp.lt.s32.totalorder %s14, 3
      %p160 = pnand %p158, %p159
      %p161 = pneg %p160
      // Predicated region
      $region9: #{tpu_custom_call.1} parent=5 // pred_check
        _
      $region10: #{tpu_custom_call.1} parent=5 // pred_check_branch
        %163 = sbr.rel (%p160) target = $region12
      $region11: #{tpu_custom_call.1} parent=5 // pred_region
        %s164 = ssub.s32 %s14, 1
        // Predicated region
        $region13: #{tpu_custom_call.1} parent=11 // pred_check
          %p165 = pneg %p61
        $region14: #{tpu_custom_call.1} parent=11 // pred_check_branch
          %167 = sbr.rel (%p165) target = $region16
        $region15: #{tpu_custom_call.1} parent=11 // pred_region
          _
        $region16: #{tpu_custom_call.1} parent=11 // pred_fallthru
          _
        // Predicated region
        $region17: #{tpu_custom_call.1} parent=11 // pred_check
          %p168 = pneg %p82
        $region18: #{tpu_custom_call.1} parent=11 // pred_check_branch
          %170 = sbr.rel (%p168) target = $region20
        $region19: #{tpu_custom_call.1} parent=11 // pred_region
          _
        $region20: #{tpu_custom_call.1} parent=11 // pred_fallthru
          _
        // Predicated region
        $region21: #{tpu_custom_call.1} parent=11 // pred_check
          %p171 = pneg %p103
        $region22: #{tpu_custom_call.1} parent=11 // pred_check_branch
          %173 = sbr.rel (%p171) target = $region24
        $region23: #{tpu_custom_call.1} parent=11 // pred_region
          _
        $region24: #{tpu_custom_call.1} parent=11 // pred_fallthru
          _
        // Predicated region
        $region25: #{tpu_custom_call.1} parent=11 // pred_check
          %p174 = pneg %p124
        $region26: #{tpu_custom_call.1} parent=11 // pred_check_branch
          %176 = sbr.rel (%p174) target = $region28
        $region27: #{tpu_custom_call.1} parent=11 // pred_region
          _
        $region28: #{tpu_custom_call.1} parent=11 // pred_fallthru
          _
      $region12: #{tpu_custom_call.1} parent=5 // pred_fallthru
        _
      %p177 = scmp.lt.s32.totalorder %s14, 2
      // Predicated region
      $region29: #{tpu_custom_call.1} parent=5 // pred_check
        %p178 = pneg %p177
      $region30: #{tpu_custom_call.1} parent=5 // pred_check_branch
        %180 = sbr.rel (%p178) target = $region32
      $region31: #{tpu_custom_call.1} parent=5 // pred_region
        // Predicated region
        $region33: #{tpu_custom_call.1} parent=31 // pred_check
          %p181 = pneg %p34
        $region34: #{tpu_custom_call.1} parent=31 // pred_check_branch
          %183 = sbr.rel (%p181) target = $region36
        $region35: #{tpu_custom_call.1} parent=31 // pred_region
          %s184 = smul.u32 2, %s14
          %p185 = scmp.lt.s32.totalorder %s184, 3
          %s186 = scalar_select %p185, %s184, 3
          %s187 = smul.addr %s186, 8
          %s188 = scalar_lea.vmem %s0, %s187
          %s189 = smul.u32 2, %s14
        $region36: #{tpu_custom_call.1} parent=31 // pred_fallthru
          _
      $region32: #{tpu_custom_call.1} parent=5 // pred_fallthru
        _
      %p190 = scmp.le.s32.totalorder 1, %s14
      %p191 = scmp.lt.s32.totalorder %s14, 3
      %p192 = pnand %p190, %p191
      %p193 = pneg %p192
      // Predicated region
      $region37: #{tpu_custom_call.1} parent=5 // pred_check
        _
      $region38: #{tpu_custom_call.1} parent=5 // pred_check_branch
        %195 = sbr.rel (%p192) target = $region40
      $region39: #{tpu_custom_call.1} parent=5 // pred_region
        %s196 = ssub.s32 %s14, 1
        %s197 = smul.u32 2, %s19
        %p198 = scmp.lt.s32.totalorder %s197, 3
        %s199 = scalar_select %p198, %s197, 3
        %s200 = smul.addr %s199, 8
        %s201 = scalar_lea.vmem %s0, %s200
        %p202 = pneg %p40
        %p203 = pneg %p37
        %p204 = pneg %p61
        %p205 = pneg %p58
        %p206 = pneg %p82
        %p207 = pneg %p79
        %p208 = pneg %p103
        %p209 = pneg %p100
        %p210 = pneg %p124
        %p211 = pneg %p121
        %p212 = pneg %p150
        %p213 = pneg %p147
        %s214 = sand.u32 %s137, 1
        %s215 = scalar_lea.sflag [#allocation3], %s214
        %s216 = sand.u32 %s137, 1
        %s217 = smul.addr %s216, 16
        %s218 = scalar_lea.vmem [#allocation2], %s217
        %s219 = smul.u32 2, %s19
        %p220 = scmp.lt.s32.totalorder %s219, 3
        %s221 = scalar_select %p220, %s219, 3
        %s222 = smul.addr %s221, 8
        %s223 = scalar_lea.vmem %s0, %s222
        %s224 = smul.u32 2, %s19
        %s225 = smul.u32 2, %s19
        %v227 = vld [vmem:[%s223] sm:$0xff]
        %v228 = vld [vmem:[%s223 + $0x8] sm:$0xff]
        %v229 = vpack.c.bf16 %v227, %v227
        %v230 = vpack.c.bf16 %v228, %v228
        %v231 = vld [vmem:[%s1] sm:$0xf]
        %v232 = vld [vmem:[%s1 + $0x4] sm:$0xf]
        %v233 = vld [vmem:[%s1 + $0x8] sm:$0xf]
        %v234 = vld [vmem:[%s2] sm:$0xff]
        %v235 = vld [vmem:[%s2 + $0x8] sm:$0xff]
        %v236 = vld [vmem:[%s2 + $0x10] sm:$0xff]
        %238 = vset.pattern.permute.xlu0 0
        %239 = vperm.xlu0 %238, %v234
        %v240 = vpop.permute.xlu0 %239
        %243 = vset.pattern.permute.xlu0 0
        %244 = vperm.xlu0 %243, %v235
        %v245 = vpop.permute.xlu0 %244
        %248 = vset.pattern.permute.xlu0 0
        %249 = vperm.xlu0 %248, %v236
        %v250 = vpop.permute.xlu0 %249
        %v255 = vunpack.c.l.b16 %v231
        %v256 = vunpack.c.l.b16 %v232
        %v257 = vunpack.c.l.b16 %v233
        %v258 = vpack.c.b16 %v256, %v255
        %v259 = vpack.c.b16 %v257, %v257
        %vm260 = vcmask 64512
        %v262 = vsel %vm260, %v258, 0
        %v265 = vsel %vm260, %v259, 0
        %vm267 = vcmask 1043456
        %v269 = vsel %vm267, %v229, 0
        %v272 = vsel %vm267, %v230, 0
        %274 = vmatprep.subr.bf16.mxu0 %v272
        %275 = vmatpush1.bf16.msra.mxu0 %v269
        %276 = vmatprep.subr.bf16.mxu0 0
        %277 = vmatpush1.bf16.msra.mxu0 0
        %278 = vmatprep.subr.bf16.mxu0 0
        %279 = vmatpush1.bf16.msra.mxu0 0
        %280 = vmatprep.subr.bf16.mxu0 0
        %281 = vmatpush1.bf16.msra.mxu0 0
        %282 = vmatprep.subr.bf16.mxu0 0
        %283 = vmatpush1.bf16.msra.mxu0 0
        %284 = vmatprep.subr.bf16.mxu0 0
        %285 = vmatpush1.bf16.msra.mxu0 0
        %286 = vmatprep.subr.bf16.mxu0 0
        %287 = vmatpush1.bf16.msra.mxu0 0
        %288 = vmatprep.subr.bf16.mxu0 0
        %289 = vmatpush1.bf16.msra.mxu0 0
        %290 = vmatprep.subr.bf16.mxu0 0
        %291 = vmatpush1.bf16.msra.mxu0 0
        %292 = vmatprep.subr.bf16.mxu0 0
        %293 = vmatpush1.bf16.msra.mxu0 0
        %294 = vmatprep.subr.bf16.mxu0 0
        %295 = vmatpush1.bf16.msra.mxu0 0
        %296 = vmatprep.subr.bf16.mxu0 0
        %297 = vmatpush1.bf16.msra.mxu0 0
        %298 = vmatprep.subr.bf16.mxu0 0
        %299 = vmatpush1.bf16.msra.mxu0 0
        %300 = vmatprep.subr.bf16.mxu0 0
        %301 = vmatpush1.bf16.msra.mxu0 0
        %302 = vmatprep.subr.bf16.mxu0 0
        %303 = vmatpush1.bf16.msra.mxu0 0
        %304 = vmatprep.subr.bf16.mxu0 0
        %305 = vmatpush1.bf16.msra.mxu0 0
        %306 = vmatprep.mubr.bf16.mxu0 0
        %307 = vmatmul.mubr.bf16.gmra.mrb[0].mxu0 %v262
        %v308 = vpop.f32.mrb[0].mxu0
        %v309 = vadd.f32 %v240, %v308
        %v310 = vpop.f32.mrb[0].mxu0
        %v311 = vadd.f32 %v240, %v310
        %v312 = vpop.f32.mrb[0].mxu0
        %v313 = vadd.f32 %v245, %v312
        %v314 = vpop.f32.mrb[0].mxu0
        %v315 = vadd.f32 %v245, %v314
        %316 = vmatprep.mubr.bf16.mxu0 0
        %317 = vmatmul.mubr.bf16.gmra.mrb[0].mxu0 %v265
        %v318 = vpop.f32.mrb[0].mxu0
        %v319 = vadd.f32 %v250, %v318
        %v320 = vpop.f32.mrb[0].mxu0
        %v321 = vadd.f32 %v250, %v320
        %v322 = vpop.f32.mrb[0].mxu0
        %v323 = vpop.f32.mrb[0].mxu0
        %324 = vdwg.mxu0
        %v325 = vpack.c.bf16 %v309, %v309
        %v326 = vpack.c.bf16 %v311, %v311
        %v327 = vpack.c.bf16 %v313, %v313
        %v328 = vpack.c.bf16 %v315, %v315
        %v329 = vpack.c.bf16 %v319, %v319
        %v330 = vpack.c.bf16 %v321, %v321
        %331 = vxpose.xlu0.c.b16.start [1/8] %v325, 128
        %332 = vxpose.xlu0.c.b16.cont [2/8] 0, 128
        %333 = vxpose.xlu0.c.b16.cont [3/8] 0, 128
        %334 = vxpose.xlu0.c.b16.cont [4/8] 0, 128
        %335 = vxpose.xlu0.c.b16.cont [5/8] 0, 128
        %336 = vxpose.xlu0.c.b16.cont [6/8] 0, 128
        %337 = vxpose.xlu0.c.b16.cont [7/8] 0, 128
        %338 = vxpose.xlu0.c.b16.end [8/8] 0, 128
        %v339 = vpop.trf.xlu0
        %v340 = vpop.trf.xlu0
        %v341 = vpop.trf.xlu0
        %v342 = vpop.trf.xlu0
        %v343 = vpop.trf.xlu0
        %v344 = vpop.trf.xlu0
        %v345 = vpop.trf.xlu0
        %v346 = vpop.trf.xlu0
        %347 = vxpose.xlu0.c.b16.start [1/8] %v326, 128
        %348 = vxpose.xlu0.c.b16.cont [2/8] 0, 128
        %349 = vxpose.xlu0.c.b16.cont [3/8] 0, 128
        %350 = vxpose.xlu0.c.b16.cont [4/8] 0, 128
        %351 = vxpose.xlu0.c.b16.cont [5/8] 0, 128
        %352 = vxpose.xlu0.c.b16.cont [6/8] 0, 128
        %353 = vxpose.xlu0.c.b16.cont [7/8] 0, 128
        %354 = vxpose.xlu0.c.b16.end [8/8] 0, 128
        %v355 = vpop.trf.xlu0
        %v356 = vpop.trf.xlu0
        %v357 = vpop.trf.xlu0
        %v358 = vpop.trf.xlu0
        %v359 = vpop.trf.xlu0
        %v360 = vpop.trf.xlu0
        %v361 = vpop.trf.xlu0
        %v362 = vpop.trf.xlu0
        %v364 = vsel %vm260, %v339, 0
        %v367 = vsel %vm260, %v340, 0
        %v370 = vsel %vm260, %v341, 0
        %v373 = vsel %vm260, %v342, 0
        %v376 = vsel %vm260, %v343, 0
        %v379 = vsel %vm260, %v344, 0
        %v382 = vsel %vm260, %v345, 0
        %v385 = vsel %vm260, %v346, 0
        %v388 = vsel %vm260, %v355, 0
        %v391 = vsel %vm260, %v356, 0
        %v394 = vsel %vm260, %v357, 0
        %v397 = vsel %vm260, %v358, 0
        %v400 = vsel %vm260, %v359, 0
        %v403 = vsel %vm260, %v360, 0
        %v406 = vsel %vm260, %v361, 0
        %v409 = vsel %vm260, %v362, 0
        %v412 = vsel %vm267, %v327, 0
        %v415 = vsel %vm267, %v328, 0
        %417 = vmatprep.subr.bf16.mxu0 %v415
        %418 = vmatpush1.bf16.msra.mxu0 %v412
        %419 = vmatprep.subr.bf16.mxu0 0
        %420 = vmatpush1.bf16.msra.mxu0 0
        %421 = vmatprep.subr.bf16.mxu0 0
        %422 = vmatpush1.bf16.msra.mxu0 0
        %423 = vmatprep.subr.bf16.mxu0 0
        %424 = vmatpush1.bf16.msra.mxu0 0
        %425 = vmatprep.subr.bf16.mxu0 0
        %426 = vmatpush1.bf16.msra.mxu0 0
        %427 = vmatprep.subr.bf16.mxu0 0
        %428 = vmatpush1.bf16.msra.mxu0 0
        %429 = vmatprep.subr.bf16.mxu0 0
        %430 = vmatpush1.bf16.msra.mxu0 0
        %431 = vmatprep.subr.bf16.mxu0 0
        %432 = vmatpush1.bf16.msra.mxu0 0
        %433 = vmatprep.subr.bf16.mxu0 0
        %434 = vmatpush1.bf16.msra.mxu0 0
        %435 = vmatprep.subr.bf16.mxu0 0
        %436 = vmatpush1.bf16.msra.mxu0 0
        %437 = vmatprep.subr.bf16.mxu0 0
        %438 = vmatpush1.bf16.msra.mxu0 0
        %439 = vmatprep.subr.bf16.mxu0 0
        %440 = vmatpush1.bf16.msra.mxu0 0
        %441 = vmatprep.subr.bf16.mxu0 0
        %442 = vmatpush1.bf16.msra.mxu0 0
        %443 = vmatprep.subr.bf16.mxu0 0
        %444 = vmatpush1.bf16.msra.mxu0 0
        %445 = vmatprep.subr.bf16.mxu0 0
        %446 = vmatpush1.bf16.msra.mxu0 0
        %447 = vmatprep.subr.bf16.mxu0 0
        %448 = vmatpush1.bf16.msra.mxu0 0
        %449 = vmatprep.mubr.bf16.mxu0 0
        %450 = vmatmul.mubr.bf16.gmra.mrb[0].mxu0 %v364
        %v451 = vpop.f32.mrb[0].mxu0
        %v452 = vadd.f32 0.0, %v451
        %v453 = vpop.f32.mrb[0].mxu0
        %v454 = vadd.f32 0.0, %v453
        %v455 = vpop.f32.mrb[0].mxu0
        %v456 = vadd.f32 0.0, %v455
        %v457 = vpop.f32.mrb[0].mxu0
        %v458 = vadd.f32 0.0, %v457
        %459 = vmatprep.mubr.bf16.mxu0 0
        %460 = vmatmul.mubr.bf16.gmra.mrb[0].mxu0 %v367
        %v461 = vpop.f32.mrb[0].mxu0
        %v462 = vadd.f32 0.0, %v461
        %v463 = vpop.f32.mrb[0].mxu0
        %v464 = vadd.f32 0.0, %v463
        %v465 = vpop.f32.mrb[0].mxu0
        %v466 = vadd.f32 0.0, %v465
        %v467 = vpop.f32.mrb[0].mxu0
        %v468 = vadd.f32 0.0, %v467
        %469 = vmatprep.mubr.bf16.mxu0 0
        %470 = vmatmul.mubr.bf16.gmra.mrb[0].mxu0 %v370
        %v471 = vpop.f32.mrb[0].mxu0
        %v472 = vadd.f32 0.0, %v471
        %v473 = vpop.f32.mrb[0].mxu0
        %v474 = vadd.f32 0.0, %v473
        %v475 = vpop.f32.mrb[0].mxu0
        %v476 = vadd.f32 0.0, %v475
        %v477 = vpop.f32.mrb[0].mxu0
        %v478 = vadd.f32 0.0, %v477
        %479 = vmatprep.mubr.bf16.mxu0 0
        %480 = vmatmul.mubr.bf16.gmra.mrb[0].mxu0 %v373
        %v481 = vpop.f32.mrb[0].mxu0
        %v482 = vadd.f32 0.0, %v481
        %v483 = vpop.f32.mrb[0].mxu0
        %v484 = vadd.f32 0.0, %v483
        %v485 = vpop.f32.mrb[0].mxu0
        %v486 = vadd.f32 0.0, %v485
        %v487 = vpop.f32.mrb[0].mxu0
        %v488 = vadd.f32 0.0, %v487
        %489 = vmatprep.mubr.bf16.mxu0 0
        %490 = vmatmul.mubr.bf16.gmra.mrb[0].mxu0 %v376
        %v491 = vpop.f32.mrb[0].mxu0
        %v492 = vadd.f32 0.0, %v491
        %v493 = vpop.f32.mrb[0].mxu0
        %v494 = vadd.f32 0.0, %v493
        %v495 = vpop.f32.mrb[0].mxu0
        %v496 = vadd.f32 0.0, %v495
        %v497 = vpop.f32.mrb[0].mxu0
        %v498 = vadd.f32 0.0, %v497
        %499 = vmatprep.mubr.bf16.mxu0 0
        %500 = vmatmul.mubr.bf16.gmra.mrb[0].mxu0 %v379
        %v501 = vpop.f32.mrb[0].mxu0
        %v502 = vadd.f32 0.0, %v501
        %v503 = vpop.f32.mrb[0].mxu0
        %v504 = vadd.f32 0.0, %v503
        %v505 = vpop.f32.mrb[0].mxu0
        %v506 = vadd.f32 0.0, %v505
        %v507 = vpop.f32.mrb[0].mxu0
        %v508 = vadd.f32 0.0, %v507
        %509 = vmatprep.mubr.bf16.mxu0 0
        %510 = vmatmul.mubr.bf16.gmra.mrb[0].mxu0 %v382
        %v511 = vpop.f32.mrb[0].mxu0
        %v512 = vadd.f32 0.0, %v511
        %v513 = vpop.f32.mrb[0].mxu0
        %v514 = vadd.f32 0.0, %v513
        %v515 = vpop.f32.mrb[0].mxu0
        %v516 = vadd.f32 0.0, %v515
        %v517 = vpop.f32.mrb[0].mxu0
        %v518 = vadd.f32 0.0, %v517
        %519 = vmatprep.mubr.bf16.mxu0 0
        %520 = vmatmul.mubr.bf16.gmra.mrb[0].mxu0 %v385
        %v521 = vpop.f32.mrb[0].mxu0
        %v522 = vadd.f32 0.0, %v521
        %v523 = vpop.f32.mrb[0].mxu0
        %v524 = vadd.f32 0.0, %v523
        %v525 = vpop.f32.mrb[0].mxu0
        %v526 = vadd.f32 0.0, %v525
        %v527 = vpop.f32.mrb[0].mxu0
        %v528 = vadd.f32 0.0, %v527
        %529 = vmatprep.mubr.bf16.mxu0 0
        %530 = vmatmul.mubr.bf16.gmra.mrb[0].mxu0 %v388
        %v531 = vpop.f32.mrb[0].mxu0
        %v532 = vadd.f32 0.0, %v531
        %v533 = vpop.f32.mrb[0].mxu0
        %v534 = vadd.f32 0.0, %v533
        %v535 = vpop.f32.mrb[0].mxu0
        %v536 = vadd.f32 0.0, %v535
        %v537 = vpop.f32.mrb[0].mxu0
        %v538 = vadd.f32 0.0, %v537
        %539 = vmatprep.mubr.bf16.mxu0 0
        %540 = vmatmul.mubr.bf16.gmra.mrb[0].mxu0 %v391
        %v541 = vpop.f32.mrb[0].mxu0
        %v542 = vadd.f32 0.0, %v541
        %v543 = vpop.f32.mrb[0].mxu0
        %v544 = vadd.f32 0.0, %v543
        %v545 = vpop.f32.mrb[0].mxu0
        %v546 = vadd.f32 0.0, %v545
        %v547 = vpop.f32.mrb[0].mxu0
        %v548 = vadd.f32 0.0, %v547
        %549 = vmatprep.mubr.bf16.mxu0 0
        %550 = vmatmul.mubr.bf16.gmra.mrb[0].mxu0 %v394
        %v551 = vpop.f32.mrb[0].mxu0
        %v552 = vadd.f32 0.0, %v551
        %v553 = vpop.f32.mrb[0].mxu0
        %v554 = vadd.f32 0.0, %v553
        %v555 = vpop.f32.mrb[0].mxu0
        %v556 = vadd.f32 0.0, %v555
        %v557 = vpop.f32.mrb[0].mxu0
        %v558 = vadd.f32 0.0, %v557
        %559 = vmatprep.mubr.bf16.mxu0 0
        %560 = vmatmul.mubr.bf16.gmra.mrb[0].mxu0 %v397
        %v561 = vpop.f32.mrb[0].mxu0
        %v562 = vadd.f32 0.0, %v561
        %v563 = vpop.f32.mrb[0].mxu0
        %v564 = vadd.f32 0.0, %v563
        %v565 = vpop.f32.mrb[0].mxu0
        %v566 = vadd.f32 0.0, %v565
        %v567 = vpop.f32.mrb[0].mxu0
        %v568 = vadd.f32 0.0, %v567
        %569 = vmatprep.mubr.bf16.mxu0 0
        %570 = vmatmul.mubr.bf16.gmra.mrb[0].mxu0 %v400
        %v571 = vpop.f32.mrb[0].mxu0
        %v572 = vadd.f32 0.0, %v571
        %v573 = vpop.f32.mrb[0].mxu0
        %v574 = vadd.f32 0.0, %v573
        %v575 = vpop.f32.mrb[0].mxu0
        %v576 = vadd.f32 0.0, %v575
        %v577 = vpop.f32.mrb[0].mxu0
        %v578 = vadd.f32 0.0, %v577
        %579 = vmatprep.mubr.bf16.mxu0 0
        %580 = vmatmul.mubr.bf16.gmra.mrb[0].mxu0 %v403
        %v581 = vpop.f32.mrb[0].mxu0
        %v582 = vadd.f32 0.0, %v581
        %v583 = vpop.f32.mrb[0].mxu0
        %v584 = vadd.f32 0.0, %v583
        %v585 = vpop.f32.mrb[0].mxu0
        %v586 = vadd.f32 0.0, %v585
        %v587 = vpop.f32.mrb[0].mxu0
        %v588 = vadd.f32 0.0, %v587
        %589 = vmatprep.mubr.bf16.mxu0 0
        %590 = vmatmul.mubr.bf16.gmra.mrb[0].mxu0 %v406
        %v591 = vpop.f32.mrb[0].mxu0
        %v592 = vadd.f32 0.0, %v591
        %v593 = vpop.f32.mrb[0].mxu0
        %v594 = vadd.f32 0.0, %v593
        %v595 = vpop.f32.mrb[0].mxu0
        %v596 = vadd.f32 0.0, %v595
        %v597 = vpop.f32.mrb[0].mxu0
        %v598 = vadd.f32 0.0, %v597
        %599 = vmatprep.mubr.bf16.mxu0 0
        %600 = vmatmul.mubr.bf16.gmra.mrb[0].mxu0 %v409
        %v601 = vpop.f32.mrb[0].mxu0
        %v602 = vadd.f32 0.0, %v601
        %v603 = vpop.f32.mrb[0].mxu0
        %v604 = vadd.f32 0.0, %v603
        %v605 = vpop.f32.mrb[0].mxu0
        %v606 = vadd.f32 0.0, %v605
        %v607 = vpop.f32.mrb[0].mxu0
        %v608 = vadd.f32 0.0, %v607
        %609 = vdwg.mxu0
        %v610 = vlaneseq
        %v611 = vshrl.u32 %v610, 7
        %v612 = vadd.s32 %v611, 8
        %v613 = vadd.s32 %v611, 16
        %v614 = vadd.s32 %v611, 24
        %v615 = vadd.s32 %v611, 32
        %v616 = vadd.s32 %v611, 40
        %v617 = vadd.s32 %v611, 48
        %v618 = vadd.s32 %v611, 56
        %v619 = vadd.s32 %v611, 64
        %v620 = vadd.s32 %v611, 72
        %v621 = vadd.s32 %v611, 80
        %v622 = vadd.s32 %v611, 88
        %v623 = vadd.s32 %v611, 96
        %v624 = vadd.s32 %v611, 104
        %v625 = vadd.s32 %v611, 112
        %v626 = vadd.s32 %v611, 120
        %v627 = vadd.s32 %v611, 128
        %v628 = vadd.s32 %v611, 136
        %v629 = vadd.s32 %v611, 144
        %v630 = vadd.s32 %v611, 152
        %v631 = vadd.s32 %v611, 160
        %v632 = vadd.s32 %v611, 168
        %v633 = vadd.s32 %v611, 176
        %v634 = vadd.s32 %v611, 184
        %v635 = vadd.s32 %v611, 192
        %v636 = vadd.s32 %v611, 200
        %v637 = vadd.s32 %v611, 208
        %v638 = vadd.s32 %v611, 216
        %v639 = vadd.s32 %v611, 224
        %v640 = vadd.s32 %v611, 232
        %v641 = vadd.s32 %v611, 240
        %v642 = vadd.s32 %v611, 248
        %v643 = vlaneseq
        %v644 = vand.u32 %v643, 127
        %v645 = vadd.s32 %v644, 128
        %v646 = vshra.s32 %v611, 4
        %v647 = vshra.s32 %v612, 4
        %v648 = vshra.s32 %v613, 4
        %v649 = vshra.s32 %v614, 4
        %v650 = vshra.s32 %v615, 4
        %v651 = vshra.s32 %v616, 4
        %v652 = vshra.s32 %v617, 4
        %v653 = vshra.s32 %v618, 4
        %v654 = vshra.s32 %v619, 4
        %v655 = vshra.s32 %v620, 4
        %v656 = vshra.s32 %v621, 4
        %v657 = vshra.s32 %v622, 4
        %v658 = vshra.s32 %v623, 4
        %v659 = vshra.s32 %v624, 4
        %v660 = vshra.s32 %v625, 4
        %v661 = vshra.s32 %v626, 4
        %v662 = vshra.s32 %v627, 4
        %v663 = vshra.s32 %v628, 4
        %v664 = vshra.s32 %v629, 4
        %v665 = vshra.s32 %v630, 4
        %v666 = vshra.s32 %v631, 4
        %v667 = vshra.s32 %v632, 4
        %v668 = vshra.s32 %v633, 4
        %v669 = vshra.s32 %v634, 4
        %v670 = vshra.s32 %v635, 4
        %v671 = vshra.s32 %v636, 4
        %v672 = vshra.s32 %v637, 4
        %v673 = vshra.s32 %v638, 4
        %v674 = vshra.s32 %v639, 4
        %v675 = vshra.s32 %v640, 4
        %v676 = vshra.s32 %v641, 4
        %v677 = vshra.s32 %v642, 4
        %v678 = vshra.s32 %v644, 4
        %v679 = vshra.s32 %v645, 4
        %vm680 = vcmp.eq.s32.totalorder %v646, %v678
        %vm681 = vcmp.eq.s32.totalorder %v646, %v679
        %vm682 = vcmp.eq.s32.totalorder %v647, %v678
        %vm683 = vcmp.eq.s32.totalorder %v647, %v679
        %vm684 = vcmp.eq.s32.totalorder %v648, %v678
        %vm685 = vcmp.eq.s32.totalorder %v648, %v679
        %vm686 = vcmp.eq.s32.totalorder %v649, %v678
        %vm687 = vcmp.eq.s32.totalorder %v649, %v679
        %vm688 = vcmp.eq.s32.totalorder %v650, %v678
        %vm689 = vcmp.eq.s32.totalorder %v650, %v679
        %vm690 = vcmp.eq.s32.totalorder %v651, %v678
        %vm691 = vcmp.eq.s32.totalorder %v651, %v679
        %vm692 = vcmp.eq.s32.totalorder %v652, %v678
        %vm693 = vcmp.eq.s32.totalorder %v652, %v679
        %vm694 = vcmp.eq.s32.totalorder %v653, %v678
        %vm695 = vcmp.eq.s32.totalorder %v653, %v679
        %vm696 = vcmp.eq.s32.totalorder %v654, %v678
        %vm697 = vcmp.eq.s32.totalorder %v654, %v679
        %vm698 = vcmp.eq.s32.totalorder %v655, %v678
        %vm699 = vcmp.eq.s32.totalorder %v655, %v679
        %vm700 = vcmp.eq.s32.totalorder %v656, %v678
        %vm701 = vcmp.eq.s32.totalorder %v656, %v679
        %vm702 = vcmp.eq.s32.totalorder %v657, %v678
        %vm703 = vcmp.eq.s32.totalorder %v657, %v679
        %vm704 = vcmp.eq.s32.totalorder %v658, %v678
        %vm705 = vcmp.eq.s32.totalorder %v658, %v679
        %vm706 = vcmp.eq.s32.totalorder %v659, %v678
        %vm707 = vcmp.eq.s32.totalorder %v659, %v679
        %vm708 = vcmp.eq.s32.totalorder %v660, %v678
        %vm709 = vcmp.eq.s32.totalorder %v660, %v679
        %vm710 = vcmp.eq.s32.totalorder %v661, %v678
        %vm711 = vcmp.eq.s32.totalorder %v661, %v679
        %vm712 = vcmp.eq.s32.totalorder %v662, %v678
        %vm713 = vcmp.eq.s32.totalorder %v662, %v679
        %vm714 = vcmp.eq.s32.totalorder %v663, %v678
        %vm715 = vcmp.eq.s32.totalorder %v663, %v679
        %vm716 = vcmp.eq.s32.totalorder %v664, %v678
        %vm717 = vcmp.eq.s32.totalorder %v664, %v679
        %vm718 = vcmp.eq.s32.totalorder %v665, %v678
        %vm719 = vcmp.eq.s32.totalorder %v665, %v679
        %vm720 = vcmp.eq.s32.totalorder %v666, %v678
        %vm721 = vcmp.eq.s32.totalorder %v666, %v679
        %vm722 = vcmp.eq.s32.totalorder %v667, %v678
        %vm723 = vcmp.eq.s32.totalorder %v667, %v679
        %vm724 = vcmp.eq.s32.totalorder %v668, %v678
        %vm725 = vcmp.eq.s32.totalorder %v668, %v679
        %vm726 = vcmp.eq.s32.totalorder %v669, %v678
        %vm727 = vcmp.eq.s32.totalorder %v669, %v679
        %vm728 = vcmp.eq.s32.totalorder %v670, %v678
        %vm729 = vcmp.eq.s32.totalorder %v670, %v679
        %vm730 = vcmp.eq.s32.totalorder %v671, %v678
        %vm731 = vcmp.eq.s32.totalorder %v671, %v679
        %vm732 = vcmp.eq.s32.totalorder %v672, %v678
        %vm733 = vcmp.eq.s32.totalorder %v672, %v679
        %vm734 = vcmp.eq.s32.totalorder %v673, %v678
        %vm735 = vcmp.eq.s32.totalorder %v673, %v679
        %vm736 = vcmp.eq.s32.totalorder %v674, %v678
        %vm737 = vcmp.eq.s32.totalorder %v674, %v679
        %vm738 = vcmp.eq.s32.totalorder %v675, %v678
        %vm739 = vcmp.eq.s32.totalorder %v675, %v679
        %vm740 = vcmp.eq.s32.totalorder %v676, %v678
        %vm741 = vcmp.eq.s32.totalorder %v676, %v679
        %vm742 = vcmp.eq.s32.totalorder %v677, %v678
        %vm743 = vcmp.eq.s32.totalorder %v677, %v679
        %v744 = vsel %vm680, %v452, -1e+30
        %v745 = vsel %vm681, %v454, -1e+30
        %v746 = vsel %vm682, %v456, -1e+30
        %v747 = vsel %vm683, %v458, -1e+30
        %v748 = vsel %vm684, %v462, -1e+30
        %v749 = vsel %vm685, %v464, -1e+30
        %v750 = vsel %vm686, %v466, -1e+30
        %v751 = vsel %vm687, %v468, -1e+30
        %v752 = vsel %vm688, %v472, -1e+30
        %v753 = vsel %vm689, %v474, -1e+30
        %v754 = vsel %vm690, %v476, -1e+30
        %v755 = vsel %vm691, %v478, -1e+30
        %v756 = vsel %vm692, %v482, -1e+30
        %v757 = vsel %vm693, %v484, -1e+30
        %v758 = vsel %vm694, %v486, -1e+30
        %v759 = vsel %vm695, %v488, -1e+30
        %v760 = vsel %vm696, %v492, -1e+30
        %v761 = vsel %vm697, %v494, -1e+30
        %v762 = vsel %vm698, %v496, -1e+30
        %v763 = vsel %vm699, %v498, -1e+30
        %v764 = vsel %vm700, %v502, -1e+30
        %v765 = vsel %vm701, %v504, -1e+30
        %v766 = vsel %vm702, %v506, -1e+30
        %v767 = vsel %vm703, %v508, -1e+30
        %v768 = vsel %vm704, %v512, -1e+30
        %v769 = vsel %vm705, %v514, -1e+30
        %v770 = vsel %vm706, %v516, -1e+30
        %v771 = vsel %vm707, %v518, -1e+30
        %v772 = vsel %vm708, %v522, -1e+30
        %v773 = vsel %vm709, %v524, -1e+30
        %v774 = vsel %vm710, %v526, -1e+30
        %v775 = vsel %vm711, %v528, -1e+30
        %v776 = vsel %vm712, %v532, -1e+30
        %v777 = vsel %vm713, %v534, -1e+30
        %v778 = vsel %vm714, %v536, -1e+30
        %v779 = vsel %vm715, %v538, -1e+30
        %v780 = vsel %vm716, %v542, -1e+30
        %v781 = vsel %vm717, %v544, -1e+30
        %v782 = vsel %vm718, %v546, -1e+30
        %v783 = vsel %vm719, %v548, -1e+30
        %v784 = vsel %vm720, %v552, -1e+30
        %v785 = vsel %vm721, %v554, -1e+30
        %v786 = vsel %vm722, %v556, -1e+30
        %v787 = vsel %vm723, %v558, -1e+30
        %v788 = vsel %vm724, %v562, -1e+30
        %v789 = vsel %vm725, %v564, -1e+30
        %v790 = vsel %vm726, %v566, -1e+30
        %v791 = vsel %vm727, %v568, -1e+30
        %v792 = vsel %vm728, %v572, -1e+30
        %v793 = vsel %vm729, %v574, -1e+30
        %v794 = vsel %vm730, %v576, -1e+30
        %v795 = vsel %vm731, %v578, -1e+30
        %v796 = vsel %vm732, %v582, -1e+30
        %v797 = vsel %vm733, %v584, -1e+30
        %v798 = vsel %vm734, %v586, -1e+30
        %v799 = vsel %vm735, %v588, -1e+30
        %v800 = vsel %vm736, %v592, -1e+30
        %v801 = vsel %vm737, %v594, -1e+30
        %v802 = vsel %vm738, %v596, -1e+30
        %v803 = vsel %vm739, %v598, -1e+30
        %v804 = vsel %vm740, %v602, -1e+30
        %v805 = vsel %vm741, %v604, -1e+30
        %v806 = vsel %vm742, %v606, -1e+30
        %v807 = vsel %vm743, %v608, -1e+30
        %v808 = vmax.f32 %v744, %v745
        %809 = vmax.xlane.f32.xlu0 %v808
        %v810 = vpop.xlane.xlu0 %809
        %v811 = vmax.f32 %v746, %v747
        %812 = vmax.xlane.f32.xlu0 %v811
        %v813 = vpop.xlane.xlu0 %812
        %v814 = vmax.f32 %v748, %v749
        %815 = vmax.xlane.f32.xlu0 %v814
        %v816 = vpop.xlane.xlu0 %815
        %v817 = vmax.f32 %v750, %v751
        %818 = vmax.xlane.f32.xlu0 %v817
        %v819 = vpop.xlane.xlu0 %818
        %v820 = vmax.f32 %v752, %v753
        %821 = vmax.xlane.f32.xlu0 %v820
        %v822 = vpop.xlane.xlu0 %821
        %v823 = vmax.f32 %v754, %v755
        %824 = vmax.xlane.f32.xlu0 %v823
        %v825 = vpop.xlane.xlu0 %824
        %v826 = vmax.f32 %v756, %v757
        %827 = vmax.xlane.f32.xlu0 %v826
        %v828 = vpop.xlane.xlu0 %827
        %v829 = vmax.f32 %v758, %v759
        %830 = vmax.xlane.f32.xlu0 %v829
        %v831 = vpop.xlane.xlu0 %830
        %v832 = vmax.f32 %v760, %v761
        %833 = vmax.xlane.f32.xlu0 %v832
        %v834 = vpop.xlane.xlu0 %833
        %v835 = vmax.f32 %v762, %v763
        %836 = vmax.xlane.f32.xlu0 %v835
        %v837 = vpop.xlane.xlu0 %836
        %v838 = vmax.f32 %v764, %v765
        %839 = vmax.xlane.f32.xlu0 %v838
        %v840 = vpop.xlane.xlu0 %839
        %v841 = vmax.f32 %v766, %v767
        %842 = vmax.xlane.f32.xlu0 %v841
        %v843 = vpop.xlane.xlu0 %842
        %v844 = vmax.f32 %v768, %v769
        %845 = vmax.xlane.f32.xlu0 %v844
        %v846 = vpop.xlane.xlu0 %845
        %v847 = vmax.f32 %v770, %v771
        %848 = vmax.xlane.f32.xlu0 %v847
        %v849 = vpop.xlane.xlu0 %848
        %v850 = vmax.f32 %v772, %v773
        %851 = vmax.xlane.f32.xlu0 %v850
        %v852 = vpop.xlane.xlu0 %851
        %v853 = vmax.f32 %v774, %v775
        %854 = vmax.xlane.f32.xlu0 %v853
        %v855 = vpop.xlane.xlu0 %854
        %v856 = vmax.f32 %v776, %v777
        %857 = vmax.xlane.f32.xlu0 %v856
        %v858 = vpop.xlane.xlu0 %857
        %v859 = vmax.f32 %v778, %v779
        %860 = vmax.xlane.f32.xlu0 %v859
        %v861 = vpop.xlane.xlu0 %860
        %v862 = vmax.f32 %v780, %v781
        %863 = vmax.xlane.f32.xlu0 %v862
        %v864 = vpop.xlane.xlu0 %863
        %v865 = vmax.f32 %v782, %v783
        %866 = vmax.xlane.f32.xlu0 %v865
        %v867 = vpop.xlane.xlu0 %866
        %v868 = vmax.f32 %v784, %v785
        %869 = vmax.xlane.f32.xlu0 %v868
        %v870 = vpop.xlane.xlu0 %869
        %v871 = vmax.f32 %v786, %v787
        %872 = vmax.xlane.f32.xlu0 %v871
        %v873 = vpop.xlane.xlu0 %872
        %v874 = vmax.f32 %v788, %v789
        %875 = vmax.xlane.f32.xlu0 %v874
        %v876 = vpop.xlane.xlu0 %875
        %v877 = vmax.f32 %v790, %v791
        %878 = vmax.xlane.f32.xlu0 %v877
        %v879 = vpop.xlane.xlu0 %878
        %v880 = vmax.f32 %v792, %v793
        %881 = vmax.xlane.f32.xlu0 %v880
        %v882 = vpop.xlane.xlu0 %881
        %v883 = vmax.f32 %v794, %v795
        %884 = vmax.xlane.f32.xlu0 %v883
        %v885 = vpop.xlane.xlu0 %884
        %v886 = vmax.f32 %v796, %v797
        %887 = vmax.xlane.f32.xlu0 %v886
        %v888 = vpop.xlane.xlu0 %887
        %v889 = vmax.f32 %v798, %v799
        %890 = vmax.xlane.f32.xlu0 %v889
        %v891 = vpop.xlane.xlu0 %890
        %v892 = vmax.f32 %v800, %v801
        %893 = vmax.xlane.f32.xlu0 %v892
        %v894 = vpop.xlane.xlu0 %893
        %v895 = vmax.f32 %v802, %v803
        %896 = vmax.xlane.f32.xlu0 %v895
        %v897 = vpop.xlane.xlu0 %896
        %v898 = vmax.f32 %v804, %v805
        %899 = vmax.xlane.f32.xlu0 %v898
        %v900 = vpop.xlane.xlu0 %899
        %v901 = vmax.f32 %v806, %v807
        %902 = vmax.xlane.f32.xlu0 %v901
        %v903 = vpop.xlane.xlu0 %902
        %v904 = vsub.f32 %v744, %v810
        %v905 = vsub.f32 %v745, %v810
        %v906 = vsub.f32 %v746, %v813
        %v907 = vsub.f32 %v747, %v813
        %v908 = vsub.f32 %v748, %v816
        %v909 = vsub.f32 %v749, %v816
        %v910 = vsub.f32 %v750, %v819
        %v911 = vsub.f32 %v751, %v819
        %v912 = vsub.f32 %v752, %v822
        %v913 = vsub.f32 %v753, %v822
        %v914 = vsub.f32 %v754, %v825
        %v915 = vsub.f32 %v755, %v825
        %v916 = vsub.f32 %v756, %v828
        %v917 = vsub.f32 %v757, %v828
        %v918 = vsub.f32 %v758, %v831
        %v919 = vsub.f32 %v759, %v831
        %v920 = vsub.f32 %v760, %v834
        %v921 = vsub.f32 %v761, %v834
        %v922 = vsub.f32 %v762, %v837
        %v923 = vsub.f32 %v763, %v837
        %v924 = vsub.f32 %v764, %v840
        %v925 = vsub.f32 %v765, %v840
        %v926 = vsub.f32 %v766, %v843
        %v927 = vsub.f32 %v767, %v843
        %v928 = vsub.f32 %v768, %v846
        %v929 = vsub.f32 %v769, %v846
        %v930 = vsub.f32 %v770, %v849
        %v931 = vsub.f32 %v771, %v849
        %v932 = vsub.f32 %v772, %v852
        %v933 = vsub.f32 %v773, %v852
        %v934 = vsub.f32 %v774, %v855
        %v935 = vsub.f32 %v775, %v855
        %v936 = vsub.f32 %v776, %v858
        %v937 = vsub.f32 %v777, %v858
        %v938 = vsub.f32 %v778, %v861
        %v939 = vsub.f32 %v779, %v861
        %v940 = vsub.f32 %v780, %v864
        %v941 = vsub.f32 %v781, %v864
        %v942 = vsub.f32 %v782, %v867
        %v943 = vsub.f32 %v783, %v867
        %v944 = vsub.f32 %v784, %v870
        %v945 = vsub.f32 %v785, %v870
        %v946 = vsub.f32 %v786, %v873
        %v947 = vsub.f32 %v787, %v873
        %v948 = vsub.f32 %v788, %v876
        %v949 = vsub.f32 %v789, %v876
        %v950 = vsub.f32 %v790, %v879
        %v951 = vsub.f32 %v791, %v879
        %v952 = vsub.f32 %v792, %v882
        %v953 = vsub.f32 %v793, %v882
        %v954 = vsub.f32 %v794, %v885
        %v955 = vsub.f32 %v795, %v885
        %v956 = vsub.f32 %v796, %v888
        %v957 = vsub.f32 %v797, %v888
        %v958 = vsub.f32 %v798, %v891
        %v959 = vsub.f32 %v799, %v891
        %v960 = vsub.f32 %v800, %v894
        %v961 = vsub.f32 %v801, %v894
        %v962 = vsub.f32 %v802, %v897
        %v963 = vsub.f32 %v803, %v897
        %v964 = vsub.f32 %v804, %v900
        %v965 = vsub.f32 %v805, %v900
        %v966 = vsub.f32 %v806, %v903
        %v967 = vsub.f32 %v807, %v903
        %v968 = vmul.f32 %v904, 1.442695
        %v969 = vpow.pop %v968
        %v970 = vmul.f32 %v905, 1.442695
        %v971 = vpow.pop %v970
        %v972 = vmul.f32 %v906, 1.442695
        %v973 = vpow.pop %v972
        %v974 = vmul.f32 %v907, 1.442695
        %v975 = vpow.pop %v974
        %v976 = vmul.f32 %v908, 1.442695
        %v977 = vpow.pop %v976
        %v978 = vmul.f32 %v909, 1.442695
        %v979 = vpow.pop %v978
        %v980 = vmul.f32 %v910, 1.442695
        %v981 = vpow.pop %v980
        %v982 = vmul.f32 %v911, 1.442695
        %v983 = vpow.pop %v982
        %v984 = vmul.f32 %v912, 1.442695
        %v985 = vpow.pop %v984
        %v986 = vmul.f32 %v913, 1.442695
        %v987 = vpow.pop %v986
        %v988 = vmul.f32 %v914, 1.442695
        %v989 = vpow.pop %v988
        %v990 = vmul.f32 %v915, 1.442695
        %v991 = vpow.pop %v990
        %v992 = vmul.f32 %v916, 1.442695
        %v993 = vpow.pop %v992
        %v994 = vmul.f32 %v917, 1.442695
        %v995 = vpow.pop %v994
        %v996 = vmul.f32 %v918, 1.442695
        %v997 = vpow.pop %v996
        %v998 = vmul.f32 %v919, 1.442695
        %v999 = vpow.pop %v998
        %v1000 = vmul.f32 %v920, 1.442695
        %v1001 = vpow.pop %v1000
        %v1002 = vmul.f32 %v921, 1.442695
        %v1003 = vpow.pop %v1002
        %v1004 = vmul.f32 %v922, 1.442695
        %v1005 = vpow.pop %v1004
        %v1006 = vmul.f32 %v923, 1.442695
        %v1007 = vpow.pop %v1006
        %v1008 = vmul.f32 %v924, 1.442695
        %v1009 = vpow.pop %v1008
        %v1010 = vmul.f32 %v925, 1.442695
        %v1011 = vpow.pop %v1010
        %v1012 = vmul.f32 %v926, 1.442695
        %v1013 = vpow.pop %v1012
        %v1014 = vmul.f32 %v927, 1.442695
        %v1015 = vpow.pop %v1014
        %v1016 = vmul.f32 %v928, 1.442695
        %v1017 = vpow.pop %v1016
        %v1018 = vmul.f32 %v929, 1.442695
        %v1019 = vpow.pop %v1018
        %v1020 = vmul.f32 %v930, 1.442695
        %v1021 = vpow.pop %v1020
        %v1022 = vmul.f32 %v931, 1.442695
        %v1023 = vpow.pop %v1022
        %v1024 = vmul.f32 %v932, 1.442695
        %v1025 = vpow.pop %v1024
        %v1026 = vmul.f32 %v933, 1.442695
        %v1027 = vpow.pop %v1026
        %v1028 = vmul.f32 %v934, 1.442695
        %v1029 = vpow.pop %v1028
        %v1030 = vmul.f32 %v935, 1.442695
        %v1031 = vpow.pop %v1030
        %v1032 = vmul.f32 %v936, 1.442695
        %v1033 = vpow.pop %v1032
        %v1034 = vmul.f32 %v937, 1.442695
        %v1035 = vpow.pop %v1034
        %v1036 = vmul.f32 %v938, 1.442695
        %v1037 = vpow.pop %v1036
        %v1038 = vmul.f32 %v939, 1.442695
        %v1039 = vpow.pop %v1038
        %v1040 = vmul.f32 %v940, 1.442695
        %v1041 = vpow.pop %v1040
        %v1042 = vmul.f32 %v941, 1.442695
        %v1043 = vpow.pop %v1042
        %v1044 = vmul.f32 %v942, 1.442695
        %v1045 = vpow.pop %v1044
        %v1046 = vmul.f32 %v943, 1.442695
        %v1047 = vpow.pop %v1046
        %v1048 = vmul.f32 %v944, 1.442695
        %v1049 = vpow.pop %v1048
        %v1050 = vmul.f32 %v945, 1.442695
        %v1051 = vpow.pop %v1050
        %v1052 = vmul.f32 %v946, 1.442695
        %v1053 = vpow.pop %v1052
        %v1054 = vmul.f32 %v947, 1.442695
        %v1055 = vpow.pop %v1054
        %v1056 = vmul.f32 %v948, 1.442695
        %v1057 = vpow.pop %v1056
        %v1058 = vmul.f32 %v949, 1.442695
        %v1059 = vpow.pop %v1058
        %v1060 = vmul.f32 %v950, 1.442695
        %v1061 = vpow.pop %v1060
        %v1062 = vmul.f32 %v951, 1.442695
        %v1063 = vpow.pop %v1062
        %v1064 = vmul.f32 %v952, 1.442695
        %v1065 = vpow.pop %v1064
        %v1066 = vmul.f32 %v953, 1.442695
        %v1067 = vpow.pop %v1066
        %v1068 = vmul.f32 %v954, 1.442695
        %v1069 = vpow.pop %v1068
        %v1070 = vmul.f32 %v955, 1.442695
        %v1071 = vpow.pop %v1070
        %v1072 = vmul.f32 %v956, 1.442695
        %v1073 = vpow.pop %v1072
        %v1074 = vmul.f32 %v957, 1.442695
        %v1075 = vpow.pop %v1074
        %v1076 = vmul.f32 %v958, 1.442695
        %v1077 = vpow.pop %v1076
        %v1078 = vmul.f32 %v959, 1.442695
        %v1079 = vpow.pop %v1078
        %v1080 = vmul.f32 %v960, 1.442695
        %v1081 = vpow.pop %v1080
        %v1082 = vmul.f32 %v961, 1.442695
        %v1083 = vpow.pop %v1082
        %v1084 = vmul.f32 %v962, 1.442695
        %v1085 = vpow.pop %v1084
        %v1086 = vmul.f32 %v963, 1.442695
        %v1087 = vpow.pop %v1086
        %v1088 = vmul.f32 %v964, 1.442695
        %v1089 = vpow.pop %v1088
        %v1090 = vmul.f32 %v965, 1.442695
        %v1091 = vpow.pop %v1090
        %v1092 = vmul.f32 %v966, 1.442695
        %v1093 = vpow.pop %v1092
        %v1094 = vmul.f32 %v967, 1.442695
        %v1095 = vpow.pop %v1094
        %v1096 = vadd.f32 %v969, %v971
        %1097 = vadd.xlane.f32.xlu0 %v1096
        %v1098 = vpop.xlane.xlu0 %1097
        %v1099 = vadd.f32 %v973, %v975
        %1100 = vadd.xlane.f32.xlu0 %v1099
        %v1101 = vpop.xlane.xlu0 %1100
        %v1102 = vadd.f32 %v977, %v979
        %1103 = vadd.xlane.f32.xlu0 %v1102
        %v1104 = vpop.xlane.xlu0 %1103
        %v1105 = vadd.f32 %v981, %v983
        %1106 = vadd.xlane.f32.xlu0 %v1105
        %v1107 = vpop.xlane.xlu0 %1106
        %v1108 = vadd.f32 %v985, %v987
        %1109 = vadd.xlane.f32.xlu0 %v1108
        %v1110 = vpop.xlane.xlu0 %1109
        %v1111 = vadd.f32 %v989, %v991
        %1112 = vadd.xlane.f32.xlu0 %v1111
        %v1113 = vpop.xlane.xlu0 %1112
        %v1114 = vadd.f32 %v993, %v995
        %1115 = vadd.xlane.f32.xlu0 %v1114
        %v1116 = vpop.xlane.xlu0 %1115
        %v1117 = vadd.f32 %v997, %v999
        %1118 = vadd.xlane.f32.xlu0 %v1117
        %v1119 = vpop.xlane.xlu0 %1118
        %v1120 = vadd.f32 %v1001, %v1003
        %1121 = vadd.xlane.f32.xlu0 %v1120
        %v1122 = vpop.xlane.xlu0 %1121
        %v1123 = vadd.f32 %v1005, %v1007
        %1124 = vadd.xlane.f32.xlu0 %v1123
        %v1125 = vpop.xlane.xlu0 %1124
        %v1126 = vadd.f32 %v1009, %v1011
        %1127 = vadd.xlane.f32.xlu0 %v1126
        %v1128 = vpop.xlane.xlu0 %1127
        %v1129 = vadd.f32 %v1013, %v1015
        %1130 = vadd.xlane.f32.xlu0 %v1129
        %v1131 = vpop.xlane.xlu0 %1130
        %v1132 = vadd.f32 %v1017, %v1019
        %1133 = vadd.xlane.f32.xlu0 %v1132
        %v1134 = vpop.xlane.xlu0 %1133
        %v1135 = vadd.f32 %v1021, %v1023
        %1136 = vadd.xlane.f32.xlu0 %v1135
        %v1137 = vpop.xlane.xlu0 %1136
        %v1138 = vadd.f32 %v1025, %v1027
        %1139 = vadd.xlane.f32.xlu0 %v1138
        %v1140 = vpop.xlane.xlu0 %1139
        %v1141 = vadd.f32 %v1029, %v1031
        %1142 = vadd.xlane.f32.xlu0 %v1141
        %v1143 = vpop.xlane.xlu0 %1142
        %v1144 = vadd.f32 %v1033, %v1035
        %1145 = vadd.xlane.f32.xlu0 %v1144
        %v1146 = vpop.xlane.xlu0 %1145
        %v1147 = vadd.f32 %v1037, %v1039
        %1148 = vadd.xlane.f32.xlu0 %v1147
        %v1149 = vpop.xlane.xlu0 %1148
        %v1150 = vadd.f32 %v1041, %v1043
        %1151 = vadd.xlane.f32.xlu0 %v1150
        %v1152 = vpop.xlane.xlu0 %1151
        %v1153 = vadd.f32 %v1045, %v1047
        %1154 = vadd.xlane.f32.xlu0 %v1153
        %v1155 = vpop.xlane.xlu0 %1154
        %v1156 = vadd.f32 %v1049, %v1051
        %1157 = vadd.xlane.f32.xlu0 %v1156
        %v1158 = vpop.xlane.xlu0 %1157
        %v1159 = vadd.f32 %v1053, %v1055
        %1160 = vadd.xlane.f32.xlu0 %v1159
        %v1161 = vpop.xlane.xlu0 %1160
        %v1162 = vadd.f32 %v1057, %v1059
        %1163 = vadd.xlane.f32.xlu0 %v1162
        %v1164 = vpop.xlane.xlu0 %1163
        %v1165 = vadd.f32 %v1061, %v1063
        %1166 = vadd.xlane.f32.xlu0 %v1165
        %v1167 = vpop.xlane.xlu0 %1166
        %v1168 = vadd.f32 %v1065, %v1067
        %1169 = vadd.xlane.f32.xlu0 %v1168
        %v1170 = vpop.xlane.xlu0 %1169
        %v1171 = vadd.f32 %v1069, %v1071
        %1172 = vadd.xlane.f32.xlu0 %v1171
        %v1173 = vpop.xlane.xlu0 %1172
        %v1174 = vadd.f32 %v1073, %v1075
        %1175 = vadd.xlane.f32.xlu0 %v1174
        %v1176 = vpop.xlane.xlu0 %1175
        %v1177 = vadd.f32 %v1077, %v1079
        %1178 = vadd.xlane.f32.xlu0 %v1177
        %v1179 = vpop.xlane.xlu0 %1178
        %v1180 = vadd.f32 %v1081, %v1083
        %1181 = vadd.xlane.f32.xlu0 %v1180
        %v1182 = vpop.xlane.xlu0 %1181
        %v1183 = vadd.f32 %v1085, %v1087
        %1184 = vadd.xlane.f32.xlu0 %v1183
        %v1185 = vpop.xlane.xlu0 %1184
        %v1186 = vadd.f32 %v1089, %v1091
        %1187 = vadd.xlane.f32.xlu0 %v1186
        %v1188 = vpop.xlane.xlu0 %1187
        %v1189 = vadd.f32 %v1093, %v1095
        %1190 = vadd.xlane.f32.xlu0 %v1189
        %v1191 = vpop.xlane.xlu0 %1190
        %v1192 = vpack.c.bf16 %v973, %v969
        %v1193 = vpack.c.bf16 %v975, %v971
        %v1194 = vpack.c.bf16 %v981, %v977
        %v1195 = vpack.c.bf16 %v983, %v979
        %v1196 = vpack.c.bf16 %v989, %v985
        %v1197 = vpack.c.bf16 %v991, %v987
        %v1198 = vpack.c.bf16 %v997, %v993
        %v1199 = vpack.c.bf16 %v999, %v995
        %v1200 = vpack.c.bf16 %v1005, %v1001
        %v1201 = vpack.c.bf16 %v1007, %v1003
        %v1202 = vpack.c.bf16 %v1013, %v1009
        %v1203 = vpack.c.bf16 %v1015, %v1011
        %v1204 = vpack.c.bf16 %v1021, %v1017
        %v1205 = vpack.c.bf16 %v1023, %v1019
        %v1206 = vpack.c.bf16 %v1029, %v1025
        %v1207 = vpack.c.bf16 %v1031, %v1027
        %v1208 = vpack.c.bf16 %v1037, %v1033
        %v1209 = vpack.c.bf16 %v1039, %v1035
        %v1210 = vpack.c.bf16 %v1045, %v1041
        %v1211 = vpack.c.bf16 %v1047, %v1043
        %v1212 = vpack.c.bf16 %v1053, %v1049
        %v1213 = vpack.c.bf16 %v1055, %v1051
        %v1214 = vpack.c.bf16 %v1061, %v1057
        %v1215 = vpack.c.bf16 %v1063, %v1059
        %v1216 = vpack.c.bf16 %v1069, %v1065
        %v1217 = vpack.c.bf16 %v1071, %v1067
        %v1218 = vpack.c.bf16 %v1077, %v1073
        %v1219 = vpack.c.bf16 %v1079, %v1075
        %v1220 = vpack.c.bf16 %v1085, %v1081
        %v1221 = vpack.c.bf16 %v1087, %v1083
        %v1222 = vpack.c.bf16 %v1093, %v1089
        %v1223 = vpack.c.bf16 %v1095, %v1091
        %1224 = vmatprep.subr.bf16.mxu0 %v330
        %1225 = vmatpush1.bf16.xpose.msra.mxu0 %v329
        %1226 = vmatprep.subr.bf16.mxu0 0
        %1227 = vmatpush1.bf16.xpose.msra.mxu0 0
        %1228 = vmatprep.subr.bf16.mxu0 0
        %1229 = vmatpush1.bf16.xpose.msra.mxu0 0
        %1230 = vmatprep.subr.bf16.mxu0 0
        %1231 = vmatpush1.bf16.xpose.msra.mxu0 0
        %1232 = vmatprep.subr.bf16.mxu0 0
        %1233 = vmatpush1.bf16.xpose.msra.mxu0 0
        %1234 = vmatprep.subr.bf16.mxu0 0
        %1235 = vmatpush1.bf16.xpose.msra.mxu0 0
        %1236 = vmatprep.subr.bf16.mxu0 0
        %1237 = vmatpush1.bf16.xpose.msra.mxu0 0
        %1238 = vmatprep.subr.bf16.mxu0 0
        %1239 = vmatpush1.bf16.xpose.msra.mxu0 0
        %1240 = vmatprep.subr.bf16.mxu0 0
        %1241 = vmatpush1.bf16.xpose.msra.mxu0 0
        %1242 = vmatprep.subr.bf16.mxu0 0
        %1243 = vmatpush1.bf16.xpose.msra.mxu0 0
        %1244 = vmatprep.subr.bf16.mxu0 0
        %1245 = vmatpush1.bf16.xpose.msra.mxu0 0
        %1246 = vmatprep.subr.bf16.mxu0 0
        %1247 = vmatpush1.bf16.xpose.msra.mxu0 0
        %1248 = vmatprep.subr.bf16.mxu0 0
        %1249 = vmatpush1.bf16.xpose.msra.mxu0 0
        %1250 = vmatprep.subr.bf16.mxu0 0
        %1251 = vmatpush1.bf16.xpose.msra.mxu0 0
        %1252 = vmatprep.subr.bf16.mxu0 0
        %1253 = vmatpush1.bf16.xpose.msra.mxu0 0
        %1254 = vmatprep.subr.bf16.mxu0 0
        %1255 = vmatpush1.bf16.xpose.msra.mxu0 0
        %1256 = vmatprep.mubr.bf16.mxu0 %v1193
        %1257 = vmatmul.mubr.bf16.gmra.mrb[0].mxu0 %v1192
        %v1258 = vpop.f32.mrb[0].mxu0
        %v1259 = vadd.f32 0.0, %v1258
        %v1260 = vpop.f32.mrb[0].mxu0
        %v1261 = vpop.f32.mrb[0].mxu0
        %v1262 = vadd.f32 0.0, %v1261
        %v1263 = vpop.f32.mrb[0].mxu0
        %1264 = vmatprep.mubr.bf16.mxu0 %v1195
        %1265 = vmatmul.mubr.bf16.gmra.mrb[0].mxu0 %v1194
        %v1266 = vpop.f32.mrb[0].mxu0
        %v1267 = vadd.f32 0.0, %v1266
        %v1268 = vpop.f32.mrb[0].mxu0
        %v1269 = vpop.f32.mrb[0].mxu0
        %v1270 = vadd.f32 0.0, %v1269
        %v1271 = vpop.f32.mrb[0].mxu0
        %1272 = vmatprep.mubr.bf16.mxu0 %v1197
        %1273 = vmatmul.mubr.bf16.gmra.mrb[0].mxu0 %v1196
        %v1274 = vpop.f32.mrb[0].mxu0
        %v1275 = vadd.f32 0.0, %v1274
        %v1276 = vpop.f32.mrb[0].mxu0
        %v1277 = vpop.f32.mrb[0].mxu0
        %v1278 = vadd.f32 0.0, %v1277
        %v1279 = vpop.f32.mrb[0].mxu0
        %1280 = vmatprep.mubr.bf16.mxu0 %v1199
        %1281 = vmatmul.mubr.bf16.gmra.mrb[0].mxu0 %v1198
        %v1282 = vpop.f32.mrb[0].mxu0
        %v1283 = vadd.f32 0.0, %v1282
        %v1284 = vpop.f32.mrb[0].mxu0
        %v1285 = vpop.f32.mrb[0].mxu0
        %v1286 = vadd.f32 0.0, %v1285
        %v1287 = vpop.f32.mrb[0].mxu0
        %1288 = vmatprep.mubr.bf16.mxu0 %v1201
        %1289 = vmatmul.mubr.bf16.gmra.mrb[0].mxu0 %v1200
        %v1290 = vpop.f32.mrb[0].mxu0
        %v1291 = vadd.f32 0.0, %v1290
        %v1292 = vpop.f32.mrb[0].mxu0
        %v1293 = vpop.f32.mrb[0].mxu0
        %v1294 = vadd.f32 0.0, %v1293
        %v1295 = vpop.f32.mrb[0].mxu0
        %1296 = vmatprep.mubr.bf16.mxu0 %v1203
        %1297 = vmatmul.mubr.bf16.gmra.mrb[0].mxu0 %v1202
        %v1298 = vpop.f32.mrb[0].mxu0
        %v1299 = vadd.f32 0.0, %v1298
        %v1300 = vpop.f32.mrb[0].mxu0
        %v1301 = vpop.f32.mrb[0].mxu0
        %v1302 = vadd.f32 0.0, %v1301
        %v1303 = vpop.f32.mrb[0].mxu0
        %1304 = vmatprep.mubr.bf16.mxu0 %v1205
        %1305 = vmatmul.mubr.bf16.gmra.mrb[0].mxu0 %v1204
        %v1306 = vpop.f32.mrb[0].mxu0
        %v1307 = vadd.f32 0.0, %v1306
        %v1308 = vpop.f32.mrb[0].mxu0
        %v1309 = vpop.f32.mrb[0].mxu0
        %v1310 = vadd.f32 0.0, %v1309
        %v1311 = vpop.f32.mrb[0].mxu0
        %1312 = vmatprep.mubr.bf16.mxu0 %v1207
        %1313 = vmatmul.mubr.bf16.gmra.mrb[0].mxu0 %v1206
        %v1314 = vpop.f32.mrb[0].mxu0
        %v1315 = vadd.f32 0.0, %v1314
        %v1316 = vpop.f32.mrb[0].mxu0
        %v1317 = vpop.f32.mrb[0].mxu0
        %v1318 = vadd.f32 0.0, %v1317
        %v1319 = vpop.f32.mrb[0].mxu0
        %1320 = vmatprep.mubr.bf16.mxu0 %v1209
        %1321 = vmatmul.mubr.bf16.gmra.mrb[0].mxu0 %v1208
        %v1322 = vpop.f32.mrb[0].mxu0
        %v1323 = vadd.f32 0.0, %v1322
        %v1324 = vpop.f32.mrb[0].mxu0
        %v1325 = vpop.f32.mrb[0].mxu0
        %v1326 = vadd.f32 0.0, %v1325
        %v1327 = vpop.f32.mrb[0].mxu0
        %1328 = vmatprep.mubr.bf16.mxu0 %v1211
        %1329 = vmatmul.mubr.bf16.gmra.mrb[0].mxu0 %v1210
        %v1330 = vpop.f32.mrb[0].mxu0
        %v1331 = vadd.f32 0.0, %v1330
        %v1332 = vpop.f32.mrb[0].mxu0
        %v1333 = vpop.f32.mrb[0].mxu0
        %v1334 = vadd.f32 0.0, %v1333
        %v1335 = vpop.f32.mrb[0].mxu0
        %1336 = vmatprep.mubr.bf16.mxu0 %v1213
        %1337 = vmatmul.mubr.bf16.gmra.mrb[0].mxu0 %v1212
        %v1338 = vpop.f32.mrb[0].mxu0
        %v1339 = vadd.f32 0.0, %v1338
        %v1340 = vpop.f32.mrb[0].mxu0
        %v1341 = vpop.f32.mrb[0].mxu0
        %v1342 = vadd.f32 0.0, %v1341
        %v1343 = vpop.f32.mrb[0].mxu0
        %1344 = vmatprep.mubr.bf16.mxu0 %v1215
        %1345 = vmatmul.mubr.bf16.gmra.mrb[0].mxu0 %v1214
        %v1346 = vpop.f32.mrb[0].mxu0
        %v1347 = vadd.f32 0.0, %v1346
        %v1348 = vpop.f32.mrb[0].mxu0
        %v1349 = vpop.f32.mrb[0].mxu0
        %v1350 = vadd.f32 0.0, %v1349
        %v1351 = vpop.f32.mrb[0].mxu0
        %1352 = vmatprep.mubr.bf16.mxu0 %v1217
        %1353 = vmatmul.mubr.bf16.gmra.mrb[0].mxu0 %v1216
        %v1354 = vpop.f32.mrb[0].mxu0
        %v1355 = vadd.f32 0.0, %v1354
        %v1356 = vpop.f32.mrb[0].mxu0
        %v1357 = vpop.f32.mrb[0].mxu0
        %v1358 = vadd.f32 0.0, %v1357
        %v1359 = vpop.f32.mrb[0].mxu0
        %1360 = vmatprep.mubr.bf16.mxu0 %v1219
        %1361 = vmatmul.mubr.bf16.gmra.mrb[0].mxu0 %v1218
        %v1362 = vpop.f32.mrb[0].mxu0
        %v1363 = vadd.f32 0.0, %v1362
        %v1364 = vpop.f32.mrb[0].mxu0
        %v1365 = vpop.f32.mrb[0].mxu0
        %v1366 = vadd.f32 0.0, %v1365
        %v1367 = vpop.f32.mrb[0].mxu0
        %1368 = vmatprep.mubr.bf16.mxu0 %v1221
        %1369 = vmatmul.mubr.bf16.gmra.mrb[0].mxu0 %v1220
        %v1370 = vpop.f32.mrb[0].mxu0
        %v1371 = vadd.f32 0.0, %v1370
        %v1372 = vpop.f32.mrb[0].mxu0
        %v1373 = vpop.f32.mrb[0].mxu0
        %v1374 = vadd.f32 0.0, %v1373
        %v1375 = vpop.f32.mrb[0].mxu0
        %1376 = vmatprep.mubr.bf16.mxu0 %v1223
        %1377 = vmatmul.mubr.bf16.gmra.mrb[0].mxu0 %v1222
        %v1378 = vpop.f32.mrb[0].mxu0
        %v1379 = vadd.f32 0.0, %v1378
        %v1380 = vpop.f32.mrb[0].mxu0
        %v1381 = vpop.f32.mrb[0].mxu0
        %v1382 = vadd.f32 0.0, %v1381
        %v1383 = vpop.f32.mrb[0].mxu0
        %1384 = vdwg.mxu0
        %v1385 = vrcp.pop %v1098
        %v1386 = vrcp.pop %v1101
        %v1387 = vrcp.pop %v1104
        %v1388 = vrcp.pop %v1107
        %v1389 = vrcp.pop %v1110
        %v1390 = vrcp.pop %v1113
        %v1391 = vrcp.pop %v1116
        %v1392 = vrcp.pop %v1119
        %v1393 = vrcp.pop %v1122
        %v1394 = vrcp.pop %v1125
        %v1395 = vrcp.pop %v1128
        %v1396 = vrcp.pop %v1131
        %v1397 = vrcp.pop %v1134
        %v1398 = vrcp.pop %v1137
        %v1399 = vrcp.pop %v1140
        %v1400 = vrcp.pop %v1143
        %v1401 = vrcp.pop %v1146
        %v1402 = vrcp.pop %v1149
        %v1403 = vrcp.pop %v1152
        %v1404 = vrcp.pop %v1155
        %v1405 = vrcp.pop %v1158
        %v1406 = vrcp.pop %v1161
        %v1407 = vrcp.pop %v1164
        %v1408 = vrcp.pop %v1167
        %v1409 = vrcp.pop %v1170
        %v1410 = vrcp.pop %v1173
        %v1411 = vrcp.pop %v1176
        %v1412 = vrcp.pop %v1179
        %v1413 = vrcp.pop %v1182
        %v1414 = vrcp.pop %v1185
        %v1415 = vrcp.pop %v1188
        %v1416 = vrcp.pop %v1191
        %v1417 = vmul.f32 %v1259, %v1385
        %v1418 = vmul.f32 %v1262, %v1386
        %v1419 = vmul.f32 %v1267, %v1387
        %v1420 = vmul.f32 %v1270, %v1388
        %v1421 = vmul.f32 %v1275, %v1389
        %v1422 = vmul.f32 %v1278, %v1390
        %v1423 = vmul.f32 %v1283, %v1391
        %v1424 = vmul.f32 %v1286, %v1392
        %v1425 = vmul.f32 %v1291, %v1393
        %v1426 = vmul.f32 %v1294, %v1394
        %v1427 = vmul.f32 %v1299, %v1395
        %v1428 = vmul.f32 %v1302, %v1396
        %v1429 = vmul.f32 %v1307, %v1397
        %v1430 = vmul.f32 %v1310, %v1398
        %v1431 = vmul.f32 %v1315, %v1399
        %v1432 = vmul.f32 %v1318, %v1400
        %v1433 = vmul.f32 %v1323, %v1401
        %v1434 = vmul.f32 %v1326, %v1402
        %v1435 = vmul.f32 %v1331, %v1403
        %v1436 = vmul.f32 %v1334, %v1404
        %v1437 = vmul.f32 %v1339, %v1405
        %v1438 = vmul.f32 %v1342, %v1406
        %v1439 = vmul.f32 %v1347, %v1407
        %v1440 = vmul.f32 %v1350, %v1408
        %v1441 = vmul.f32 %v1355, %v1409
        %v1442 = vmul.f32 %v1358, %v1410
        %v1443 = vmul.f32 %v1363, %v1411
        %v1444 = vmul.f32 %v1366, %v1412
        %v1445 = vmul.f32 %v1371, %v1413
        %v1446 = vmul.f32 %v1374, %v1414
        %v1447 = vmul.f32 %v1379, %v1415
        %v1448 = vmul.f32 %v1382, %v1416
        %v1449 = vld [vmem:[%s3] sm:$0xf]
        %v1450 = vpack.c.bf16 %v1418, %v1417
        %v1451 = vpack.c.bf16 %v1420, %v1419
        %v1452 = vpack.c.bf16 %v1422, %v1421
        %v1453 = vpack.c.bf16 %v1424, %v1423
        %v1454 = vpack.c.bf16 %v1426, %v1425
        %v1455 = vpack.c.bf16 %v1428, %v1427
        %v1456 = vpack.c.bf16 %v1430, %v1429
        %v1457 = vpack.c.bf16 %v1432, %v1431
        %v1458 = vpack.c.bf16 %v1434, %v1433
        %v1459 = vpack.c.bf16 %v1436, %v1435
        %v1460 = vpack.c.bf16 %v1438, %v1437
        %v1461 = vpack.c.bf16 %v1440, %v1439
        %v1462 = vpack.c.bf16 %v1442, %v1441
        %v1463 = vpack.c.bf16 %v1444, %v1443
        %v1464 = vpack.c.bf16 %v1446, %v1445
        %v1465 = vpack.c.bf16 %v1448, %v1447
        %v1466 = vld [vmem:[%s4] sm:$0xff]
        %1468 = vset.pattern.permute.xlu0 0
        %1469 = vperm.xlu0 %1468, %v1466
        %v1470 = vpop.permute.xlu0 %1469
        %v1473 = vsel %vm260, %v1449, 0
        %v1476 = vsel %vm260, %v1450, 0
        %v1479 = vsel %vm260, %v1451, 0
        %v1482 = vsel %vm260, %v1452, 0
        %v1485 = vsel %vm260, %v1453, 0
        %v1488 = vsel %vm260, %v1454, 0
        %v1491 = vsel %vm260, %v1455, 0
        %v1494 = vsel %vm260, %v1456, 0
        %v1497 = vsel %vm260, %v1457, 0
        %v1500 = vsel %vm260, %v1458, 0
        %v1503 = vsel %vm260, %v1459, 0
        %v1506 = vsel %vm260, %v1460, 0
        %v1509 = vsel %vm260, %v1461, 0
        %v1512 = vsel %vm260, %v1462, 0
        %v1515 = vsel %vm260, %v1463, 0
        %v1518 = vsel %vm260, %v1464, 0
        %v1521 = vsel %vm260, %v1465, 0
        %1523 = vmatprep.subr.bf16.mxu0 0
        %1524 = vmatpush1.bf16.xpose.msra.mxu0 %v1476
        %1525 = vmatprep.subr.bf16.mxu0 0
        %1526 = vmatpush1.bf16.xpose.msra.mxu0 %v1479
        %1527 = vmatprep.subr.bf16.mxu0 0
        %1528 = vmatpush1.bf16.xpose.msra.mxu0 %v1482
        %1529 = vmatprep.subr.bf16.mxu0 0
        %1530 = vmatpush1.bf16.xpose.msra.mxu0 %v1485
        %1531 = vmatprep.subr.bf16.mxu0 0
        %1532 = vmatpush1.bf16.xpose.msra.mxu0 %v1488
        %1533 = vmatprep.subr.bf16.mxu0 0
        %1534 = vmatpush1.bf16.xpose.msra.mxu0 %v1491
        %1535 = vmatprep.subr.bf16.mxu0 0
        %1536 = vmatpush1.bf16.xpose.msra.mxu0 %v1494
        %1537 = vmatprep.subr.bf16.mxu0 0
        %1538 = vmatpush1.bf16.xpose.msra.mxu0 %v1497
        %1539 = vmatprep.subr.bf16.mxu0 0
        %1540 = vmatpush1.bf16.xpose.msra.mxu0 %v1500
        %1541 = vmatprep.subr.bf16.mxu0 0
        %1542 = vmatpush1.bf16.xpose.msra.mxu0 %v1503
        %1543 = vmatprep.subr.bf16.mxu0 0
        %1544 = vmatpush1.bf16.xpose.msra.mxu0 %v1506
        %1545 = vmatprep.subr.bf16.mxu0 0
        %1546 = vmatpush1.bf16.xpose.msra.mxu0 %v1509
        %1547 = vmatprep.subr.bf16.mxu0 0
        %1548 = vmatpush1.bf16.xpose.msra.mxu0 %v1512
        %1549 = vmatprep.subr.bf16.mxu0 0
        %1550 = vmatpush1.bf16.xpose.msra.mxu0 %v1515
        %1551 = vmatprep.subr.bf16.mxu0 0
        %1552 = vmatpush1.bf16.xpose.msra.mxu0 %v1518
        %1553 = vmatprep.subr.bf16.mxu0 0
        %1554 = vmatpush1.bf16.xpose.msra.mxu0 %v1521
        %1555 = vmatprep.mubr.bf16.mxu0 0
        %1556 = vmatmul.mubr.bf16.gmra.mrb[0].mxu0 %v1473
        %v1557 = vpop.f32.mrb[0].mxu0
        %v1558 = vadd.f32 %v1470, %v1557
        %v1559 = vpop.f32.mrb[0].mxu0
        %v1560 = vadd.f32 %v1470, %v1559
        %v1561 = vpop.f32.mrb[0].mxu0
        %v1562 = vpop.f32.mrb[0].mxu0
        %1563 = vdwg.mxu0
        %v1564 = vadd.f32 %v1558, %v227
        %v1565 = vadd.f32 %v1560, %v228
        %1566 = vst [vmem:[%s218] sm:$0xff] %v1564
        %1567 = vst [vmem:[%s218 + $0x8] sm:$0xff] %v1565
        %s1568 = sand.u32 %s137, 1
        %s1569 = scalar_lea.sflag [#allocation3], %s1568
        %s1570 = sand.u32 %s137, 1
        %s1571 = smul.addr %s1570, 16
        %s1572 = scalar_lea.vmem [#allocation2], %s1571
        // Predicated region
        $region41: #{tpu_custom_call.1} parent=39 // pred_check
          %p1573 = pneg %p147
        $region42: #{tpu_custom_call.1} parent=39 // pred_check_branch
          %1575 = sbr.rel (%p1573) target = $region44
        $region43: #{tpu_custom_call.1} parent=39 // pred_region
          %s1576 = smul.u32 2, %s19
          %s1578 = ssub.s32 256, 256
          %1579 = vsyncadd %s1569, %s1578
          %s1580 = smul.addr %s1576, 128
          %s1581 = scalar_lea.hbm %s5, %s1580
          %s1583 = sshll.u32 %s1572, 4
          %s1584 = int_to_ptr.vmem [resolvable:$true] %s1583
          %1586 = dma.vmem_to_hbm [thread:$0]  %s1584, 256, %s1581, %s1569
        $region44: #{tpu_custom_call.1} parent=39 // pred_fallthru
          _
      $region40: #{tpu_custom_call.1} parent=5 // pred_fallthru
        _
      %p1587 = scmp.le.s32.totalorder 2, %s14
      // Predicated region
      $region45: #{tpu_custom_call.1} parent=5 // pred_check
        %p1588 = pneg %p1587
      $region46: #{tpu_custom_call.1} parent=5 // pred_check_branch
        %1590 = sbr.rel (%p1588) target = $region48
      $region47: #{tpu_custom_call.1} parent=5 // pred_region
        %s1591 = ssub.s32 %s14, 2
        // Predicated region
        $region49: #{tpu_custom_call.1} parent=47 // pred_check
          %p1592 = pneg %p153
        $region50: #{tpu_custom_call.1} parent=47 // pred_check_branch
          %1594 = sbr.rel (%p1592) target = $region52
        $region51: #{tpu_custom_call.1} parent=47 // pred_region
          %s1595 = sand.u32 %s138, 1
          %s1596 = scalar_lea.sflag [#allocation3], %s1595
          %s1597 = sand.u32 %s138, 1
          %s1598 = smul.addr %s1597, 16
          %s1599 = scalar_lea.vmem [#allocation2], %s1598
          %1600 = dma.done %s1596, 256
        $region52: #{tpu_custom_call.1} parent=47 // pred_fallthru
          _
      $region48: #{tpu_custom_call.1} parent=5 // pred_fallthru
        _
    $region6: #{tpu_custom_call.1} parent=1 // loop_footer
      %s18 = sadd.s32 1, %s14
    $region7: #{tpu_custom_call.1} parent=1 // loop_footer_branch
      %13 = sbr.rel target = $region3
    $region8: #{tpu_custom_call.1} parent=1 // loop_exit
      _
    %1601 = vsyncpa [#allocation3], 1
    %s1602 = scalar_lea.sflag [#allocation3], 1
    %1603 = vsyncpa %s1602, 1

</llo_original>
